<compile_context>
chip_gen: v5e
topology: v5e:2x2
jax: 0.10.0
libtpu: 0.0.40
codegen_flags: <defaults>
</compile_context>

<pallas_src>
import math

import jax
import jax.numpy as jnp
from jax.experimental import pallas as pl
from jax.experimental.pallas import tpu as pltpu

_UNROLL_INPUT_DIM = 16  # unroll layer-1 into VPU MACs when concat width is tiny


def critic_kernel(s_ref, a_ref, l1_ref, l2_ref, l3_ref, o_ref):
    """Fused 3-layer MLP on one batch tile, entirely in VMEM.

    s_ref:  (TB, S)            state tile
    a_ref:  (TB, A)            action tile
    l1_ref: (S+A+1, H)         [w1 (input-major); b1]
    l2_ref: (H+1, H)           [w2; b2]
    l3_ref: (OUT+1, H)         [w3 (torch layout, OUT rows); b3 in lanes 0..OUT-1]
    o_ref:  (OUT, TB)          lane-dense output tile
    """
    S = s_ref.shape[1]
    A = a_ref.shape[1]
    H = l2_ref.shape[1]
    OUT = o_ref.shape[0]
    TB = s_ref.shape[0]

    s = s_ref[...]
    a = a_ref[...]

    # ---- Layer 1: split-weight formulation replaces the torch.cat ----------
    l1 = l1_ref[...]                         # (S+A+1, H), one padded vreg tile
    b1 = l1[S + A:S + A + 1, :]              # (1, H)
    if S + A <= _UNROLL_INPUT_DIM:
        # A few VPU broadcast multiply-adds: no padded K=4/K=1 MXU passes.
        h1 = b1
        for k in range(S):
            h1 = h1 + s[:, k:k + 1] * l1[k:k + 1, :]
        for k in range(A):
            h1 = h1 + a[:, k:k + 1] * l1[S + k:S + k + 1, :]
    else:
        h1 = (jnp.dot(s, l1[0:S, :], preferred_element_type=jnp.float32)
              + jnp.dot(a, l1[S:S + A, :], preferred_element_type=jnp.float32)
              + b1)
    h1 = jnp.maximum(h1, 0.0)                # ReLU

    # ---- Layer 2: the one real MXU matmul (TB,H) @ (H,H) -------------------
    w2 = l2_ref[0:H, :]                      # (H, H), tile-aligned static slice
    b2 = l2_ref[H:H + 1, :]                  # (1, H)
    h2 = jnp.dot(h1, w2, preferred_element_type=jnp.float32) + b2
    h2 = jnp.maximum(h2, 0.0)                # ReLU

    # ---- Layer 3: value head, stored lane-dense -----------------------------
    w3 = l3_ref[0:OUT, :]                    # (OUT, H) torch layout
    if OUT == 1:
        b3 = l3_ref[OUT:OUT + 1, 0:1]        # (1, 1)
        # VPU multiply + XLU cross-lane reduce; result laid across lanes
        # (a ~2-vreg relayout) so the store is one unmasked lane-dense row.
        red = jnp.sum(h2 * w3, axis=-1)      # (TB,)
        o_ref[...] = (red.reshape(1, TB) + b3).astype(o_ref.dtype)
    else:
        b3 = l3_ref[OUT:OUT + 1, 0:OUT]      # (1, OUT)
        y = jax.lax.dot_general(h2, w3, (((1,), (1,)), ((), ())),
                                preferred_element_type=jnp.float32) + b3
        o_ref[...] = y.T.astype(o_ref.dtype)  # (OUT, TB)


def _pick_batch_tile(batch):
    """Choose the batch tile.

    Fewer, bigger tiles win: per-grid-step overhead (~0.35 us) dwarfs the
    per-tile compute here, and activation VMEM (~tb*hidden*4 B) is tiny, so we
    keep the whole batch in one step up to 4096 rows.  Above that, pick the
    largest divisor that is a multiple of 128 (keeps the lane-dense (OUT, tb)
    output block legal).  The final fallback returns the full batch, which is
    always legal (block == full array dim) but may pad sublanes if batch is
    not a multiple of 8.
    """
    cap = 4096
    if batch <= cap:
        return batch
    best = batch
    for tb in range(128, cap + 1, 128):
        if batch % tb == 0:
            best = tb
    return best


def critic_forward(state, action, params):
    """state: (B, S), action: (B, A) -> (B, out_size). No wrapper-side concat."""
    l1_pack, l2_pack, l3_pack = params
    B, state_dim = state.shape
    action_dim = action.shape[1]
    hidden = l2_pack.shape[1]
    out_size = l3_pack.shape[0] - 1

    tb = _pick_batch_tile(B)
    grid = (B // tb,)          # demo size: (1,) — deliberate, see header comment

    def batch_tiled(last):
        return pl.BlockSpec((tb, last), lambda i: (i, 0))

    def resident(arr):
        # Constant index_map keeps the packed slab VMEM-resident across grid
        # steps; Buffered(1) drops the useless second pipeline buffer.
        return pl.BlockSpec(arr.shape, lambda i: (0, 0),
                            pipeline_mode=pl.Buffered(1))

    flops = 2 * B * ((state_dim + action_dim) * hidden
                     + hidden * hidden + hidden * out_size)
    bytes_accessed = 4 * (state.size + action.size + l1_pack.size
                          + l2_pack.size + l3_pack.size + B * out_size)

    out_t = pl.pallas_call(
        critic_kernel,
        out_shape=jax.ShapeDtypeStruct((out_size, B), jnp.float32),
        grid_spec=pltpu.PrefetchScalarGridSpec(
            num_scalar_prefetch=0,
            grid=grid,
            in_specs=[batch_tiled(state_dim),
                      batch_tiled(action_dim),
                      resident(l1_pack),
                      resident(l2_pack),
                      resident(l3_pack)],
            out_specs=pl.BlockSpec((out_size, tb), lambda i: (0, i)),
        ),
        compiler_params=pltpu.CompilerParams(
            dimension_semantics=("parallel",)),
        cost_estimate=pl.CostEstimate(flops=flops, transcendentals=0,
                                      bytes_accessed=bytes_accessed),
    )(state, action, l1_pack, l2_pack, l3_pack)

    # Lane-dense (out_size, B) -> module layout (B, out_size).
    if out_size == 1:
        return out_t.reshape(B, 1)   # free bitcast: identical linear layout
    return out_t.T


def init_critic_params(key, state_dim, action_dim, hidden_size, output_size):
    """nn.Linear-style init (uniform +/- 1/sqrt(fan_in)), packed per layer:
       l1_pack: (state_dim+action_dim+1, H)  = [w1 rows (input-major); b1 row]
       l2_pack: (H+1, H)                     = [w2 rows; b2 row]
       l3_pack: (out+1, H)                   = [w3 rows (torch layout); b3 row]
    """
    input_size = state_dim + action_dim
    k1w, k1b, k2w, k2b, k3w, k3b = jax.random.split(key, 6)

    def u(k, shape, fan_in):
        bound = 1.0 / math.sqrt(fan_in)
        return jax.random.uniform(k, shape, jnp.float32, -bound, bound)

    w1 = u(k1w, (input_size, hidden_size), input_size)     # [in, out] layout
    b1 = u(k1b, (1, hidden_size), input_size)
    w2 = u(k2w, (hidden_size, hidden_size), hidden_size)
    b2 = u(k2b, (1, hidden_size), hidden_size)
    w3 = u(k3w, (output_size, hidden_size), hidden_size)   # torch layout [out, in]
    b3 = u(k3b, (output_size,), hidden_size)

    l1_pack = jnp.concatenate([w1, b1], axis=0)
    l2_pack = jnp.concatenate([w2, b2], axis=0)
    b3_row = jnp.zeros((1, hidden_size), jnp.float32).at[0, :output_size].set(b3)
    l3_pack = jnp.concatenate([w3, b3_row], axis=0)
    return (l1_pack, l2_pack, l3_pack)


if __name__ == "__main__":
    # CartPole-v1 critic: state_dim=4, action_dim=1, hidden=128 (lane-dense),
    # batch=256.  _pick_batch_tile(256) -> 256, so grid=(1,): one grid step on
    # purpose (per-step overhead exceeds per-tile compute at this size).
    batch = 256
    state_dim, action_dim = 4, 1
    hidden_size = 128
    output_size = 1

    key = jax.random.PRNGKey(0)
    kp, ks, ka = jax.random.split(key, 3)

    params = init_critic_params(kp, state_dim, action_dim, hidden_size, output_size)
    state = jax.random.normal(ks, (batch, state_dim), jnp.float32)
    action = jax.random.normal(ka, (batch, action_dim), jnp.float32)

    out = critic_forward(state, action, params)
    out = jax.block_until_ready(out)

    # Pure-JAX reference using the original concat formulation of the module.
    l1_pack, l2_pack, l3_pack = params
    in_dim = state_dim + action_dim
    w1, b1 = l1_pack[:in_dim], l1_pack[in_dim:in_dim + 1]
    w2, b2 = l2_pack[:hidden_size], l2_pack[hidden_size:hidden_size + 1]
    w3 = l3_pack[:output_size]
    b3 = l3_pack[output_size, :output_size]
    x = jnp.concatenate([state, action], axis=1)
    h = jnp.maximum(x @ w1 + b1, 0.0)
    h = jnp.maximum(h @ w2 + b2, 0.0)
    ref = h @ w3.T + b3

    assert out.shape == (batch, output_size)
    assert jnp.allclose(out, ref, atol=1e-4, rtol=1e-4)

    print("KERNEL_OK")
</pallas_src>

<mosaic_0001>
module attributes {stable_mosaic.version = 11 : i64} {
  func.func @critic_kernel(%arg0: i32, %arg1: memref<256x4xf32, #tpu.memory_space<vmem>>, %arg2: memref<256x1xf32, #tpu.memory_space<vmem>>, %arg3: memref<6x128xf32, #tpu.memory_space<vmem>>, %arg4: memref<129x128xf32, #tpu.memory_space<vmem>>, %arg5: memref<2x128xf32, #tpu.memory_space<vmem>>, %arg6: memref<1x256xf32, #tpu.memory_space<vmem>>) attributes {dimension_semantics = [#tpu.dimension_semantics<parallel>], iteration_bounds = array<i64: 1>, scalar_prefetch = 0 : i64, scratch_operands = 0 : i64, tpu.core_type = #tpu.core_type<tc>, window_params = [{transform_indices = @transform_0, window_bounds = array<i64: 256, 4>}, {transform_indices = @transform_1, window_bounds = array<i64: 256, 1>}, {pipeline_mode = #tpu.pipeline_mode<synchronous>, transform_indices = @transform_2, window_bounds = array<i64: 6, 128>}, {pipeline_mode = #tpu.pipeline_mode<synchronous>, transform_indices = @transform_3, window_bounds = array<i64: 129, 128>}, {pipeline_mode = #tpu.pipeline_mode<synchronous>, transform_indices = @transform_4, window_bounds = array<i64: 2, 128>}, {transform_indices = @transform_5, window_bounds = array<i64: 1, 256>}]} {
    %c0 = arith.constant 0 : index
    %c0_0 = arith.constant 0 : index
    %0 = vector.load %arg1[%c0, %c0_0] : memref<256x4xf32, #tpu.memory_space<vmem>>, vector<256x4xf32>
    %c0_1 = arith.constant 0 : index
    %c0_2 = arith.constant 0 : index
    %1 = vector.load %arg2[%c0_1, %c0_2] : memref<256x1xf32, #tpu.memory_space<vmem>>, vector<256x1xf32>
    %c0_3 = arith.constant 0 : index
    %c0_4 = arith.constant 0 : index
    %2 = vector.load %arg3[%c0_3, %c0_4] : memref<6x128xf32, #tpu.memory_space<vmem>>, vector<6x128xf32>
    %3 = vector.extract_strided_slice %2 {offsets = [5, 0], sizes = [1, 128], strides = [1, 1]} : vector<6x128xf32> to vector<1x128xf32>
    %4 = vector.extract_strided_slice %0 {offsets = [0, 0], sizes = [256, 1], strides = [1, 1]} : vector<256x4xf32> to vector<256x1xf32>
    %5 = vector.extract_strided_slice %2 {offsets = [0, 0], sizes = [1, 128], strides = [1, 1]} : vector<6x128xf32> to vector<1x128xf32>
    %6 = vector.broadcast %4 : vector<256x1xf32> to vector<256x128xf32>
    %7 = vector.broadcast %5 : vector<1x128xf32> to vector<256x128xf32>
    %8 = arith.mulf %6, %7 : vector<256x128xf32>
    %9 = vector.broadcast %3 : vector<1x128xf32> to vector<256x128xf32>
    %10 = arith.addf %9, %8 : vector<256x128xf32>
    %11 = vector.extract_strided_slice %0 {offsets = [0, 1], sizes = [256, 1], strides = [1, 1]} : vector<256x4xf32> to vector<256x1xf32>
    %12 = vector.extract_strided_slice %2 {offsets = [1, 0], sizes = [1, 128], strides = [1, 1]} : vector<6x128xf32> to vector<1x128xf32>
    %13 = vector.broadcast %11 : vector<256x1xf32> to vector<256x128xf32>
    %14 = vector.broadcast %12 : vector<1x128xf32> to vector<256x128xf32>
    %15 = arith.mulf %13, %14 : vector<256x128xf32>
    %16 = arith.addf %10, %15 : vector<256x128xf32>
    %17 = vector.extract_strided_slice %0 {offsets = [0, 2], sizes = [256, 1], strides = [1, 1]} : vector<256x4xf32> to vector<256x1xf32>
    %18 = vector.extract_strided_slice %2 {offsets = [2, 0], sizes = [1, 128], strides = [1, 1]} : vector<6x128xf32> to vector<1x128xf32>
    %19 = vector.broadcast %17 : vector<256x1xf32> to vector<256x128xf32>
    %20 = vector.broadcast %18 : vector<1x128xf32> to vector<256x128xf32>
    %21 = arith.mulf %19, %20 : vector<256x128xf32>
    %22 = arith.addf %16, %21 : vector<256x128xf32>
    %23 = vector.extract_strided_slice %0 {offsets = [0, 3], sizes = [256, 1], strides = [1, 1]} : vector<256x4xf32> to vector<256x1xf32>
    %24 = vector.extract_strided_slice %2 {offsets = [3, 0], sizes = [1, 128], strides = [1, 1]} : vector<6x128xf32> to vector<1x128xf32>
    %25 = vector.broadcast %23 : vector<256x1xf32> to vector<256x128xf32>
    %26 = vector.broadcast %24 : vector<1x128xf32> to vector<256x128xf32>
    %27 = arith.mulf %25, %26 : vector<256x128xf32>
    %28 = arith.addf %22, %27 : vector<256x128xf32>
    %29 = vector.extract_strided_slice %2 {offsets = [4, 0], sizes = [1, 128], strides = [1, 1]} : vector<6x128xf32> to vector<1x128xf32>
    %30 = vector.broadcast %1 : vector<256x1xf32> to vector<256x128xf32>
    %31 = vector.broadcast %29 : vector<1x128xf32> to vector<256x128xf32>
    %32 = arith.mulf %30, %31 : vector<256x128xf32>
    %33 = arith.addf %28, %32 : vector<256x128xf32>
    %cst = arith.constant 0.000000e+00 : f32
    %34 = vector.broadcast %cst : f32 to vector<256x128xf32>
    %35 = arith.maximumf %33, %34 : vector<256x128xf32>
    %c0_5 = arith.constant 0 : index
    %c0_6 = arith.constant 0 : index
    %36 = vector.load %arg4[%c0_5, %c0_6] : memref<129x128xf32, #tpu.memory_space<vmem>>, vector<128x128xf32>
    %c128 = arith.constant 128 : index
    %c0_7 = arith.constant 0 : index
    %37 = vector.load %arg4[%c128, %c0_7] : memref<129x128xf32, #tpu.memory_space<vmem>>, vector<1x128xf32>
    %cst_8 = arith.constant dense<0.000000e+00> : vector<256x128xf32>
    %38 = tpu.matmul %35, %36, %cst_8 {dimension_numbers = #tpu.dot_dimension_numbers<[1], [0], [0], [1], [0, 0, 1, 1], [], []>} : vector<256x128xf32>, vector<128x128xf32>, vector<256x128xf32> -> vector<256x128xf32>
    %39 = vector.broadcast %37 : vector<1x128xf32> to vector<256x128xf32>
    %40 = arith.addf %38, %39 : vector<256x128xf32>
    %cst_9 = arith.constant 0.000000e+00 : f32
    %41 = vector.broadcast %cst_9 : f32 to vector<256x128xf32>
    %42 = arith.maximumf %40, %41 : vector<256x128xf32>
    %c0_10 = arith.constant 0 : index
    %c0_11 = arith.constant 0 : index
    %43 = vector.load %arg5[%c0_10, %c0_11] : memref<2x128xf32, #tpu.memory_space<vmem>>, vector<1x128xf32>
    %c1 = arith.constant 1 : index
    %c0_12 = arith.constant 0 : index
    %44 = vector.load %arg5[%c1, %c0_12] : memref<2x128xf32, #tpu.memory_space<vmem>>, vector<1x1xf32>
    %45 = vector.broadcast %43 : vector<1x128xf32> to vector<256x128xf32>
    %46 = arith.mulf %42, %45 : vector<256x128xf32>
    %cst_13 = arith.constant dense<0.000000e+00> : vector<256xf32>
    %47 = vector.multi_reduction <add>, %46, %cst_13 [1] : vector<256x128xf32> to vector<256xf32>
    %48 = vector.shape_cast %47 : vector<256xf32> to vector<1x256xf32>
    %49 = vector.broadcast %44 : vector<1x1xf32> to vector<1x256xf32>
    %50 = arith.addf %48, %49 : vector<1x256xf32>
    %c0_14 = arith.constant 0 : index
    %c0_15 = arith.constant 0 : index
    %51 = vector.load %arg6[%c0_14, %c0_15] : memref<1x256xf32, #tpu.memory_space<vmem>>, vector<1x256xf32>
    tpu.vector_store %arg6[%c0_14, %c0_15], %50 {strides = array<i32>} : memref<1x256xf32, #tpu.memory_space<vmem>>, vector<1x256xf32>,
    return
  }
  func.func @transform_0(%arg0: i32) -> (i32, i32) {
    %c0_i32 = arith.constant 0 : i32
    %c0_i32_0 = arith.constant 0 : i32
    return %arg0, %c0_i32 : i32, i32
  }
  func.func @transform_1(%arg0: i32) -> (i32, i32) {
    %c0_i32 = arith.constant 0 : i32
    %c0_i32_0 = arith.constant 0 : i32
    return %arg0, %c0_i32 : i32, i32
  }
  func.func @transform_2(%arg0: i32) -> (i32, i32) {
    %c0_i32 = arith.constant 0 : i32
    %c0_i32_0 = arith.constant 0 : i32
    %c0_i32_1 = arith.constant 0 : i32
    return %c0_i32, %c0_i32_0 : i32, i32
  }
  func.func @transform_3(%arg0: i32) -> (i32, i32) {
    %c0_i32 = arith.constant 0 : i32
    %c0_i32_0 = arith.constant 0 : i32
    %c0_i32_1 = arith.constant 0 : i32
    return %c0_i32, %c0_i32_0 : i32, i32
  }
  func.func @transform_4(%arg0: i32) -> (i32, i32) {
    %c0_i32 = arith.constant 0 : i32
    %c0_i32_0 = arith.constant 0 : i32
    %c0_i32_1 = arith.constant 0 : i32
    return %c0_i32, %c0_i32_0 : i32, i32
  }
  func.func @transform_5(%arg0: i32) -> (i32, i32) {
    %c0_i32 = arith.constant 0 : i32
    %c0_i32_0 = arith.constant 0 : i32
    return %c0_i32, %arg0 : i32, i32
  }
}

</mosaic_0001>

<llo_original>
// kernel: tpu_custom_call.1
$region0: #{tpu_custom_call.1}
  #allocation0 [shape = 'u32[]', space=smem, size = 0x4, offset = 0x4, fixed_abs, tag = 'smem constant byte address 0x4 - core index']
  #allocation1 [shape = 'u32[72,128]{1,0:T(1,128)}', space=vmem, size = 0x9000, scoped, tag = 'internal scratch']
  %s0 = inlined_call_operand.vmem [shape: f32[256,4], index: 0, kind: input, shape index: {}]
  %s1 = inlined_call_operand.vmem [shape: f32[256,1], index: 1, kind: input, shape index: {}]
  %s2 = inlined_call_operand.vmem [shape: f32[6,128], index: 2, kind: input, shape index: {}]
  %s3 = inlined_call_operand.vmem [shape: f32[129,128], index: 3, kind: input, shape index: {}]
  %s4 = inlined_call_operand.vmem [shape: f32[2,128], index: 4, kind: input, shape index: {}]
  %s5 = inlined_call_operand.hbm [shape: f32[1,256], index: 5, kind: output, shape index: {}]
  %s6 = sld [smem:[#allocation0]]
  $region30: #{tpu_custom_call.1} parent=0
    _
  %s8 = ssub.s32 1, %s6
  %s9 = scalar_select 0, %s8, %s6
  $region1: #{tpu_custom_call.1} parent=0
    #allocation2 [shape = 'u8[1024]{0}', space=vmem, size = 0x400, scoped, tag = 'output window, operand 0, single buffered']
    #allocation3 [shape = 's32[1]{0}', space=sflag, size = 0x4, scoped, tag = 'scoped memory for tpu_custom_call.1']
    %10 = vsyncpa [#allocation3], 0
    // Predicated region
    $region2: #{tpu_custom_call.1} parent=1 // pred_check
      _
    $region3: #{tpu_custom_call.1} parent=1 // pred_check_branch
      %12 = sbr.rel (0) target = $region5
    $region4: #{tpu_custom_call.1} parent=1 // pred_region
      _
    $region5: #{tpu_custom_call.1} parent=1 // pred_fallthru
      _
    // Predicated region
    $region6: #{tpu_custom_call.1} parent=1 // pred_check
      _
    $region7: #{tpu_custom_call.1} parent=1 // pred_check_branch
      %14 = sbr.rel (0) target = $region9
    $region8: #{tpu_custom_call.1} parent=1 // pred_region
      _
    $region9: #{tpu_custom_call.1} parent=1 // pred_fallthru
      _
    // Predicated region
    $region10: #{tpu_custom_call.1} parent=1 // pred_check
      _
    $region11: #{tpu_custom_call.1} parent=1 // pred_check_branch
      %16 = sbr.rel (0) target = $region13
    $region12: #{tpu_custom_call.1} parent=1 // pred_region
      _
    $region13: #{tpu_custom_call.1} parent=1 // pred_fallthru
      _
    // Predicated region
    $region14: #{tpu_custom_call.1} parent=1 // pred_check
      _
    $region15: #{tpu_custom_call.1} parent=1 // pred_check_branch
      %18 = sbr.rel (0) target = $region17
    $region16: #{tpu_custom_call.1} parent=1 // pred_region
      _
    $region17: #{tpu_custom_call.1} parent=1 // pred_fallthru
      _
    // Predicated region
    $region18: #{tpu_custom_call.1} parent=1 // pred_check
      _
    $region19: #{tpu_custom_call.1} parent=1 // pred_check_branch
      %20 = sbr.rel (0) target = $region21
    $region20: #{tpu_custom_call.1} parent=1 // pred_region
      _
    $region21: #{tpu_custom_call.1} parent=1 // pred_fallthru
      _
    %v21 = vld [vmem:[%s0] sm:$0xff]
    %v22 = vld [vmem:[%s0 + $0x8] sm:$0xff]
    %v23 = vld [vmem:[%s0 + $0x10] sm:$0xff]
    %v24 = vld [vmem:[%s0 + $0x18] sm:$0xff]
    %v25 = vld [vmem:[%s0 + $0x20] sm:$0xff]
    %v26 = vld [vmem:[%s0 + $0x28] sm:$0xff]
    %v27 = vld [vmem:[%s0 + $0x30] sm:$0xff]
    %v28 = vld [vmem:[%s0 + $0x38] sm:$0xff]
    %v29 = vld [vmem:[%s0 + $0x40] sm:$0xff]
    %v30 = vld [vmem:[%s0 + $0x48] sm:$0xff]
    %v31 = vld [vmem:[%s0 + $0x50] sm:$0xff]
    %v32 = vld [vmem:[%s0 + $0x58] sm:$0xff]
    %v33 = vld [vmem:[%s0 + $0x60] sm:$0xff]
    %v34 = vld [vmem:[%s0 + $0x68] sm:$0xff]
    %v35 = vld [vmem:[%s0 + $0x70] sm:$0xff]
    %v36 = vld [vmem:[%s0 + $0x78] sm:$0xff]
    %v37 = vld [vmem:[%s0 + $0x80] sm:$0xff]
    %v38 = vld [vmem:[%s0 + $0x88] sm:$0xff]
    %v39 = vld [vmem:[%s0 + $0x90] sm:$0xff]
    %v40 = vld [vmem:[%s0 + $0x98] sm:$0xff]
    %v41 = vld [vmem:[%s0 + $0xa0] sm:$0xff]
    %v42 = vld [vmem:[%s0 + $0xa8] sm:$0xff]
    %v43 = vld [vmem:[%s0 + $0xb0] sm:$0xff]
    %v44 = vld [vmem:[%s0 + $0xb8] sm:$0xff]
    %v45 = vld [vmem:[%s0 + $0xc0] sm:$0xff]
    %v46 = vld [vmem:[%s0 + $0xc8] sm:$0xff]
    %v47 = vld [vmem:[%s0 + $0xd0] sm:$0xff]
    %v48 = vld [vmem:[%s0 + $0xd8] sm:$0xff]
    %v49 = vld [vmem:[%s0 + $0xe0] sm:$0xff]
    %v50 = vld [vmem:[%s0 + $0xe8] sm:$0xff]
    %v51 = vld [vmem:[%s0 + $0xf0] sm:$0xff]
    %v52 = vld [vmem:[%s0 + $0xf8] sm:$0xff]
    %v53 = vld [vmem:[%s1] sm:$0xff]
    %v54 = vld [vmem:[%s1 + $0x8] sm:$0xff]
    %v55 = vld [vmem:[%s1 + $0x10] sm:$0xff]
    %v56 = vld [vmem:[%s1 + $0x18] sm:$0xff]
    %v57 = vld [vmem:[%s1 + $0x20] sm:$0xff]
    %v58 = vld [vmem:[%s1 + $0x28] sm:$0xff]
    %v59 = vld [vmem:[%s1 + $0x30] sm:$0xff]
    %v60 = vld [vmem:[%s1 + $0x38] sm:$0xff]
    %v61 = vld [vmem:[%s1 + $0x40] sm:$0xff]
    %v62 = vld [vmem:[%s1 + $0x48] sm:$0xff]
    %v63 = vld [vmem:[%s1 + $0x50] sm:$0xff]
    %v64 = vld [vmem:[%s1 + $0x58] sm:$0xff]
    %v65 = vld [vmem:[%s1 + $0x60] sm:$0xff]
    %v66 = vld [vmem:[%s1 + $0x68] sm:$0xff]
    %v67 = vld [vmem:[%s1 + $0x70] sm:$0xff]
    %v68 = vld [vmem:[%s1 + $0x78] sm:$0xff]
    %v69 = vld [vmem:[%s1 + $0x80] sm:$0xff]
    %v70 = vld [vmem:[%s1 + $0x88] sm:$0xff]
    %v71 = vld [vmem:[%s1 + $0x90] sm:$0xff]
    %v72 = vld [vmem:[%s1 + $0x98] sm:$0xff]
    %v73 = vld [vmem:[%s1 + $0xa0] sm:$0xff]
    %v74 = vld [vmem:[%s1 + $0xa8] sm:$0xff]
    %v75 = vld [vmem:[%s1 + $0xb0] sm:$0xff]
    %v76 = vld [vmem:[%s1 + $0xb8] sm:$0xff]
    %v77 = vld [vmem:[%s1 + $0xc0] sm:$0xff]
    %v78 = vld [vmem:[%s1 + $0xc8] sm:$0xff]
    %v79 = vld [vmem:[%s1 + $0xd0] sm:$0xff]
    %v80 = vld [vmem:[%s1 + $0xd8] sm:$0xff]
    %v81 = vld [vmem:[%s1 + $0xe0] sm:$0xff]
    %v82 = vld [vmem:[%s1 + $0xe8] sm:$0xff]
    %v83 = vld [vmem:[%s1 + $0xf0] sm:$0xff]
    %v84 = vld [vmem:[%s1 + $0xf8] sm:$0xff]
    %v85 = vld [vmem:[%s2] sm:$0x3f]
    %87 = vset.pattern.permute.xlu0 0
    %88 = vperm.xlu0 %87, %v21
    %v89 = vpop.permute.xlu0 %88
    %92 = vset.pattern.permute.xlu0 0
    %93 = vperm.xlu0 %92, %v22
    %v94 = vpop.permute.xlu0 %93
    %97 = vset.pattern.permute.xlu0 0
    %98 = vperm.xlu0 %97, %v23
    %v99 = vpop.permute.xlu0 %98
    %102 = vset.pattern.permute.xlu0 0
    %103 = vperm.xlu0 %102, %v24
    %v104 = vpop.permute.xlu0 %103
    %107 = vset.pattern.permute.xlu0 0
    %108 = vperm.xlu0 %107, %v25
    %v109 = vpop.permute.xlu0 %108
    %112 = vset.pattern.permute.xlu0 0
    %113 = vperm.xlu0 %112, %v26
    %v114 = vpop.permute.xlu0 %113
    %117 = vset.pattern.permute.xlu0 0
    %118 = vperm.xlu0 %117, %v27
    %v119 = vpop.permute.xlu0 %118
    %122 = vset.pattern.permute.xlu0 0
    %123 = vperm.xlu0 %122, %v28
    %v124 = vpop.permute.xlu0 %123
    %127 = vset.pattern.permute.xlu0 0
    %128 = vperm.xlu0 %127, %v29
    %v129 = vpop.permute.xlu0 %128
    %132 = vset.pattern.permute.xlu0 0
    %133 = vperm.xlu0 %132, %v30
    %v134 = vpop.permute.xlu0 %133
    %137 = vset.pattern.permute.xlu0 0
    %138 = vperm.xlu0 %137, %v31
    %v139 = vpop.permute.xlu0 %138
    %142 = vset.pattern.permute.xlu0 0
    %143 = vperm.xlu0 %142, %v32
    %v144 = vpop.permute.xlu0 %143
    %147 = vset.pattern.permute.xlu0 0
    %148 = vperm.xlu0 %147, %v33
    %v149 = vpop.permute.xlu0 %148
    %152 = vset.pattern.permute.xlu0 0
    %153 = vperm.xlu0 %152, %v34
    %v154 = vpop.permute.xlu0 %153
    %157 = vset.pattern.permute.xlu0 0
    %158 = vperm.xlu0 %157, %v35
    %v159 = vpop.permute.xlu0 %158
    %162 = vset.pattern.permute.xlu0 0
    %163 = vperm.xlu0 %162, %v36
    %v164 = vpop.permute.xlu0 %163
    %167 = vset.pattern.permute.xlu0 0
    %168 = vperm.xlu0 %167, %v37
    %v169 = vpop.permute.xlu0 %168
    %172 = vset.pattern.permute.xlu0 0
    %173 = vperm.xlu0 %172, %v38
    %v174 = vpop.permute.xlu0 %173
    %177 = vset.pattern.permute.xlu0 0
    %178 = vperm.xlu0 %177, %v39
    %v179 = vpop.permute.xlu0 %178
    %182 = vset.pattern.permute.xlu0 0
    %183 = vperm.xlu0 %182, %v40
    %v184 = vpop.permute.xlu0 %183
    %187 = vset.pattern.permute.xlu0 0
    %188 = vperm.xlu0 %187, %v41
    %v189 = vpop.permute.xlu0 %188
    %192 = vset.pattern.permute.xlu0 0
    %193 = vperm.xlu0 %192, %v42
    %v194 = vpop.permute.xlu0 %193
    %197 = vset.pattern.permute.xlu0 0
    %198 = vperm.xlu0 %197, %v43
    %v199 = vpop.permute.xlu0 %198
    %202 = vset.pattern.permute.xlu0 0
    %203 = vperm.xlu0 %202, %v44
    %v204 = vpop.permute.xlu0 %203
    %207 = vset.pattern.permute.xlu0 0
    %208 = vperm.xlu0 %207, %v45
    %v209 = vpop.permute.xlu0 %208
    %212 = vset.pattern.permute.xlu0 0
    %213 = vperm.xlu0 %212, %v46
    %v214 = vpop.permute.xlu0 %213
    %217 = vset.pattern.permute.xlu0 0
    %218 = vperm.xlu0 %217, %v47
    %v219 = vpop.permute.xlu0 %218
    %222 = vset.pattern.permute.xlu0 0
    %223 = vperm.xlu0 %222, %v48
    %v224 = vpop.permute.xlu0 %223
    %227 = vset.pattern.permute.xlu0 0
    %228 = vperm.xlu0 %227, %v49
    %v229 = vpop.permute.xlu0 %228
    %232 = vset.pattern.permute.xlu0 0
    %233 = vperm.xlu0 %232, %v50
    %v234 = vpop.permute.xlu0 %233
    %237 = vset.pattern.permute.xlu0 0
    %238 = vperm.xlu0 %237, %v51
    %v239 = vpop.permute.xlu0 %238
    %242 = vset.pattern.permute.xlu0 0
    %243 = vperm.xlu0 %242, %v52
    %v244 = vpop.permute.xlu0 %243
    %v246 = vperm.slane %v85, 0
    %v247 = vmul.f32 %v89, %v246
    %v248 = vmul.f32 %v94, %v246
    %v249 = vmul.f32 %v99, %v246
    %v250 = vmul.f32 %v104, %v246
    %v251 = vmul.f32 %v109, %v246
    %v252 = vmul.f32 %v114, %v246
    %v253 = vmul.f32 %v119, %v246
    %v254 = vmul.f32 %v124, %v246
    %v255 = vmul.f32 %v129, %v246
    %v256 = vmul.f32 %v134, %v246
    %v257 = vmul.f32 %v139, %v246
    %v258 = vmul.f32 %v144, %v246
    %v259 = vmul.f32 %v149, %v246
    %v260 = vmul.f32 %v154, %v246
    %v261 = vmul.f32 %v159, %v246
    %v262 = vmul.f32 %v164, %v246
    %v263 = vmul.f32 %v169, %v246
    %v264 = vmul.f32 %v174, %v246
    %v265 = vmul.f32 %v179, %v246
    %v266 = vmul.f32 %v184, %v246
    %v267 = vmul.f32 %v189, %v246
    %v268 = vmul.f32 %v194, %v246
    %v269 = vmul.f32 %v199, %v246
    %v270 = vmul.f32 %v204, %v246
    %v271 = vmul.f32 %v209, %v246
    %v272 = vmul.f32 %v214, %v246
    %v273 = vmul.f32 %v219, %v246
    %v274 = vmul.f32 %v224, %v246
    %v275 = vmul.f32 %v229, %v246
    %v276 = vmul.f32 %v234, %v246
    %v277 = vmul.f32 %v239, %v246
    %v278 = vmul.f32 %v244, %v246
    %v279 = vperm.slane %v85, 5
    %v280 = vadd.f32 %v279, %v247
    %v281 = vadd.f32 %v279, %v248
    %v282 = vadd.f32 %v279, %v249
    %v283 = vadd.f32 %v279, %v250
    %v284 = vadd.f32 %v279, %v251
    %v285 = vadd.f32 %v279, %v252
    %v286 = vadd.f32 %v279, %v253
    %v287 = vadd.f32 %v279, %v254
    %v288 = vadd.f32 %v279, %v255
    %v289 = vadd.f32 %v279, %v256
    %v290 = vadd.f32 %v279, %v257
    %v291 = vadd.f32 %v279, %v258
    %v292 = vadd.f32 %v279, %v259
    %v293 = vadd.f32 %v279, %v260
    %v294 = vadd.f32 %v279, %v261
    %v295 = vadd.f32 %v279, %v262
    %v296 = vadd.f32 %v279, %v263
    %v297 = vadd.f32 %v279, %v264
    %v298 = vadd.f32 %v279, %v265
    %v299 = vadd.f32 %v279, %v266
    %v300 = vadd.f32 %v279, %v267
    %v301 = vadd.f32 %v279, %v268
    %v302 = vadd.f32 %v279, %v269
    %v303 = vadd.f32 %v279, %v270
    %v304 = vadd.f32 %v279, %v271
    %v305 = vadd.f32 %v279, %v272
    %v306 = vadd.f32 %v279, %v273
    %v307 = vadd.f32 %v279, %v274
    %v308 = vadd.f32 %v279, %v275
    %v309 = vadd.f32 %v279, %v276
    %v310 = vadd.f32 %v279, %v277
    %v311 = vadd.f32 %v279, %v278
    %312 = vset.pattern.permute.xlu0 1
    %313 = vperm.xlu0 %312, %v21
    %v314 = vpop.permute.xlu0 %313
    %316 = vset.pattern.permute.xlu0 1
    %317 = vperm.xlu0 %316, %v22
    %v318 = vpop.permute.xlu0 %317
    %320 = vset.pattern.permute.xlu0 1
    %321 = vperm.xlu0 %320, %v23
    %v322 = vpop.permute.xlu0 %321
    %324 = vset.pattern.permute.xlu0 1
    %325 = vperm.xlu0 %324, %v24
    %v326 = vpop.permute.xlu0 %325
    %328 = vset.pattern.permute.xlu0 1
    %329 = vperm.xlu0 %328, %v25
    %v330 = vpop.permute.xlu0 %329
    %332 = vset.pattern.permute.xlu0 1
    %333 = vperm.xlu0 %332, %v26
    %v334 = vpop.permute.xlu0 %333
    %336 = vset.pattern.permute.xlu0 1
    %337 = vperm.xlu0 %336, %v27
    %v338 = vpop.permute.xlu0 %337
    %340 = vset.pattern.permute.xlu0 1
    %341 = vperm.xlu0 %340, %v28
    %v342 = vpop.permute.xlu0 %341
    %344 = vset.pattern.permute.xlu0 1
    %345 = vperm.xlu0 %344, %v29
    %v346 = vpop.permute.xlu0 %345
    %348 = vset.pattern.permute.xlu0 1
    %349 = vperm.xlu0 %348, %v30
    %v350 = vpop.permute.xlu0 %349
    %352 = vset.pattern.permute.xlu0 1
    %353 = vperm.xlu0 %352, %v31
    %v354 = vpop.permute.xlu0 %353
    %356 = vset.pattern.permute.xlu0 1
    %357 = vperm.xlu0 %356, %v32
    %v358 = vpop.permute.xlu0 %357
    %360 = vset.pattern.permute.xlu0 1
    %361 = vperm.xlu0 %360, %v33
    %v362 = vpop.permute.xlu0 %361
    %364 = vset.pattern.permute.xlu0 1
    %365 = vperm.xlu0 %364, %v34
    %v366 = vpop.permute.xlu0 %365
    %368 = vset.pattern.permute.xlu0 1
    %369 = vperm.xlu0 %368, %v35
    %v370 = vpop.permute.xlu0 %369
    %372 = vset.pattern.permute.xlu0 1
    %373 = vperm.xlu0 %372, %v36
    %v374 = vpop.permute.xlu0 %373
    %376 = vset.pattern.permute.xlu0 1
    %377 = vperm.xlu0 %376, %v37
    %v378 = vpop.permute.xlu0 %377
    %380 = vset.pattern.permute.xlu0 1
    %381 = vperm.xlu0 %380, %v38
    %v382 = vpop.permute.xlu0 %381
    %384 = vset.pattern.permute.xlu0 1
    %385 = vperm.xlu0 %384, %v39
    %v386 = vpop.permute.xlu0 %385
    %388 = vset.pattern.permute.xlu0 1
    %389 = vperm.xlu0 %388, %v40
    %v390 = vpop.permute.xlu0 %389
    %392 = vset.pattern.permute.xlu0 1
    %393 = vperm.xlu0 %392, %v41
    %v394 = vpop.permute.xlu0 %393
    %396 = vset.pattern.permute.xlu0 1
    %397 = vperm.xlu0 %396, %v42
    %v398 = vpop.permute.xlu0 %397
    %400 = vset.pattern.permute.xlu0 1
    %401 = vperm.xlu0 %400, %v43
    %v402 = vpop.permute.xlu0 %401
    %404 = vset.pattern.permute.xlu0 1
    %405 = vperm.xlu0 %404, %v44
    %v406 = vpop.permute.xlu0 %405
    %408 = vset.pattern.permute.xlu0 1
    %409 = vperm.xlu0 %408, %v45
    %v410 = vpop.permute.xlu0 %409
    %412 = vset.pattern.permute.xlu0 1
    %413 = vperm.xlu0 %412, %v46
    %v414 = vpop.permute.xlu0 %413
    %416 = vset.pattern.permute.xlu0 1
    %417 = vperm.xlu0 %416, %v47
    %v418 = vpop.permute.xlu0 %417
    %420 = vset.pattern.permute.xlu0 1
    %421 = vperm.xlu0 %420, %v48
    %v422 = vpop.permute.xlu0 %421
    %424 = vset.pattern.permute.xlu0 1
    %425 = vperm.xlu0 %424, %v49
    %v426 = vpop.permute.xlu0 %425
    %428 = vset.pattern.permute.xlu0 1
    %429 = vperm.xlu0 %428, %v50
    %v430 = vpop.permute.xlu0 %429
    %432 = vset.pattern.permute.xlu0 1
    %433 = vperm.xlu0 %432, %v51
    %v434 = vpop.permute.xlu0 %433
    %436 = vset.pattern.permute.xlu0 1
    %437 = vperm.xlu0 %436, %v52
    %v438 = vpop.permute.xlu0 %437
    %v440 = vperm.slane %v85, 1
    %v441 = vmul.f32 %v314, %v440
    %v442 = vmul.f32 %v318, %v440
    %v443 = vmul.f32 %v322, %v440
    %v444 = vmul.f32 %v326, %v440
    %v445 = vmul.f32 %v330, %v440
    %v446 = vmul.f32 %v334, %v440
    %v447 = vmul.f32 %v338, %v440
    %v448 = vmul.f32 %v342, %v440
    %v449 = vmul.f32 %v346, %v440
    %v450 = vmul.f32 %v350, %v440
    %v451 = vmul.f32 %v354, %v440
    %v452 = vmul.f32 %v358, %v440
    %v453 = vmul.f32 %v362, %v440
    %v454 = vmul.f32 %v366, %v440
    %v455 = vmul.f32 %v370, %v440
    %v456 = vmul.f32 %v374, %v440
    %v457 = vmul.f32 %v378, %v440
    %v458 = vmul.f32 %v382, %v440
    %v459 = vmul.f32 %v386, %v440
    %v460 = vmul.f32 %v390, %v440
    %v461 = vmul.f32 %v394, %v440
    %v462 = vmul.f32 %v398, %v440
    %v463 = vmul.f32 %v402, %v440
    %v464 = vmul.f32 %v406, %v440
    %v465 = vmul.f32 %v410, %v440
    %v466 = vmul.f32 %v414, %v440
    %v467 = vmul.f32 %v418, %v440
    %v468 = vmul.f32 %v422, %v440
    %v469 = vmul.f32 %v426, %v440
    %v470 = vmul.f32 %v430, %v440
    %v471 = vmul.f32 %v434, %v440
    %v472 = vmul.f32 %v438, %v440
    %v473 = vadd.f32 %v280, %v441
    %v474 = vadd.f32 %v281, %v442
    %v475 = vadd.f32 %v282, %v443
    %v476 = vadd.f32 %v283, %v444
    %v477 = vadd.f32 %v284, %v445
    %v478 = vadd.f32 %v285, %v446
    %v479 = vadd.f32 %v286, %v447
    %v480 = vadd.f32 %v287, %v448
    %v481 = vadd.f32 %v288, %v449
    %v482 = vadd.f32 %v289, %v450
    %v483 = vadd.f32 %v290, %v451
    %v484 = vadd.f32 %v291, %v452
    %v485 = vadd.f32 %v292, %v453
    %v486 = vadd.f32 %v293, %v454
    %v487 = vadd.f32 %v294, %v455
    %v488 = vadd.f32 %v295, %v456
    %v489 = vadd.f32 %v296, %v457
    %v490 = vadd.f32 %v297, %v458
    %v491 = vadd.f32 %v298, %v459
    %v492 = vadd.f32 %v299, %v460
    %v493 = vadd.f32 %v300, %v461
    %v494 = vadd.f32 %v301, %v462
    %v495 = vadd.f32 %v302, %v463
    %v496 = vadd.f32 %v303, %v464
    %v497 = vadd.f32 %v304, %v465
    %v498 = vadd.f32 %v305, %v466
    %v499 = vadd.f32 %v306, %v467
    %v500 = vadd.f32 %v307, %v468
    %v501 = vadd.f32 %v308, %v469
    %v502 = vadd.f32 %v309, %v470
    %v503 = vadd.f32 %v310, %v471
    %v504 = vadd.f32 %v311, %v472
    %505 = vset.pattern.permute.xlu0 2
    %506 = vperm.xlu0 %505, %v21
    %v507 = vpop.permute.xlu0 %506
    %509 = vset.pattern.permute.xlu0 2
    %510 = vperm.xlu0 %509, %v22
    %v511 = vpop.permute.xlu0 %510
    %513 = vset.pattern.permute.xlu0 2
    %514 = vperm.xlu0 %513, %v23
    %v515 = vpop.permute.xlu0 %514
    %517 = vset.pattern.permute.xlu0 2
    %518 = vperm.xlu0 %517, %v24
    %v519 = vpop.permute.xlu0 %518
    %521 = vset.pattern.permute.xlu0 2
    %522 = vperm.xlu0 %521, %v25
    %v523 = vpop.permute.xlu0 %522
    %525 = vset.pattern.permute.xlu0 2
    %526 = vperm.xlu0 %525, %v26
    %v527 = vpop.permute.xlu0 %526
    %529 = vset.pattern.permute.xlu0 2
    %530 = vperm.xlu0 %529, %v27
    %v531 = vpop.permute.xlu0 %530
    %533 = vset.pattern.permute.xlu0 2
    %534 = vperm.xlu0 %533, %v28
    %v535 = vpop.permute.xlu0 %534
    %537 = vset.pattern.permute.xlu0 2
    %538 = vperm.xlu0 %537, %v29
    %v539 = vpop.permute.xlu0 %538
    %541 = vset.pattern.permute.xlu0 2
    %542 = vperm.xlu0 %541, %v30
    %v543 = vpop.permute.xlu0 %542
    %545 = vset.pattern.permute.xlu0 2
    %546 = vperm.xlu0 %545, %v31
    %v547 = vpop.permute.xlu0 %546
    %549 = vset.pattern.permute.xlu0 2
    %550 = vperm.xlu0 %549, %v32
    %v551 = vpop.permute.xlu0 %550
    %553 = vset.pattern.permute.xlu0 2
    %554 = vperm.xlu0 %553, %v33
    %v555 = vpop.permute.xlu0 %554
    %557 = vset.pattern.permute.xlu0 2
    %558 = vperm.xlu0 %557, %v34
    %v559 = vpop.permute.xlu0 %558
    %561 = vset.pattern.permute.xlu0 2
    %562 = vperm.xlu0 %561, %v35
    %v563 = vpop.permute.xlu0 %562
    %565 = vset.pattern.permute.xlu0 2
    %566 = vperm.xlu0 %565, %v36
    %v567 = vpop.permute.xlu0 %566
    %569 = vset.pattern.permute.xlu0 2
    %570 = vperm.xlu0 %569, %v37
    %v571 = vpop.permute.xlu0 %570
    %573 = vset.pattern.permute.xlu0 2
    %574 = vperm.xlu0 %573, %v38
    %v575 = vpop.permute.xlu0 %574
    %577 = vset.pattern.permute.xlu0 2
    %578 = vperm.xlu0 %577, %v39
    %v579 = vpop.permute.xlu0 %578
    %581 = vset.pattern.permute.xlu0 2
    %582 = vperm.xlu0 %581, %v40
    %v583 = vpop.permute.xlu0 %582
    %585 = vset.pattern.permute.xlu0 2
    %586 = vperm.xlu0 %585, %v41
    %v587 = vpop.permute.xlu0 %586
    %589 = vset.pattern.permute.xlu0 2
    %590 = vperm.xlu0 %589, %v42
    %v591 = vpop.permute.xlu0 %590
    %593 = vset.pattern.permute.xlu0 2
    %594 = vperm.xlu0 %593, %v43
    %v595 = vpop.permute.xlu0 %594
    %597 = vset.pattern.permute.xlu0 2
    %598 = vperm.xlu0 %597, %v44
    %v599 = vpop.permute.xlu0 %598
    %601 = vset.pattern.permute.xlu0 2
    %602 = vperm.xlu0 %601, %v45
    %v603 = vpop.permute.xlu0 %602
    %605 = vset.pattern.permute.xlu0 2
    %606 = vperm.xlu0 %605, %v46
    %v607 = vpop.permute.xlu0 %606
    %609 = vset.pattern.permute.xlu0 2
    %610 = vperm.xlu0 %609, %v47
    %v611 = vpop.permute.xlu0 %610
    %613 = vset.pattern.permute.xlu0 2
    %614 = vperm.xlu0 %613, %v48
    %v615 = vpop.permute.xlu0 %614
    %617 = vset.pattern.permute.xlu0 2
    %618 = vperm.xlu0 %617, %v49
    %v619 = vpop.permute.xlu0 %618
    %621 = vset.pattern.permute.xlu0 2
    %622 = vperm.xlu0 %621, %v50
    %v623 = vpop.permute.xlu0 %622
    %625 = vset.pattern.permute.xlu0 2
    %626 = vperm.xlu0 %625, %v51
    %v627 = vpop.permute.xlu0 %626
    %629 = vset.pattern.permute.xlu0 2
    %630 = vperm.xlu0 %629, %v52
    %v631 = vpop.permute.xlu0 %630
    %v633 = vperm.slane %v85, 2
    %v634 = vmul.f32 %v507, %v633
    %v635 = vmul.f32 %v511, %v633
    %v636 = vmul.f32 %v515, %v633
    %v637 = vmul.f32 %v519, %v633
    %v638 = vmul.f32 %v523, %v633
    %v639 = vmul.f32 %v527, %v633
    %v640 = vmul.f32 %v531, %v633
    %v641 = vmul.f32 %v535, %v633
    %v642 = vmul.f32 %v539, %v633
    %v643 = vmul.f32 %v543, %v633
    %v644 = vmul.f32 %v547, %v633
    %v645 = vmul.f32 %v551, %v633
    %v646 = vmul.f32 %v555, %v633
    %v647 = vmul.f32 %v559, %v633
    %v648 = vmul.f32 %v563, %v633
    %v649 = vmul.f32 %v567, %v633
    %v650 = vmul.f32 %v571, %v633
    %v651 = vmul.f32 %v575, %v633
    %v652 = vmul.f32 %v579, %v633
    %v653 = vmul.f32 %v583, %v633
    %v654 = vmul.f32 %v587, %v633
    %v655 = vmul.f32 %v591, %v633
    %v656 = vmul.f32 %v595, %v633
    %v657 = vmul.f32 %v599, %v633
    %v658 = vmul.f32 %v603, %v633
    %v659 = vmul.f32 %v607, %v633
    %v660 = vmul.f32 %v611, %v633
    %v661 = vmul.f32 %v615, %v633
    %v662 = vmul.f32 %v619, %v633
    %v663 = vmul.f32 %v623, %v633
    %v664 = vmul.f32 %v627, %v633
    %v665 = vmul.f32 %v631, %v633
    %v666 = vadd.f32 %v473, %v634
    %v667 = vadd.f32 %v474, %v635
    %v668 = vadd.f32 %v475, %v636
    %v669 = vadd.f32 %v476, %v637
    %v670 = vadd.f32 %v477, %v638
    %v671 = vadd.f32 %v478, %v639
    %v672 = vadd.f32 %v479, %v640
    %v673 = vadd.f32 %v480, %v641
    %v674 = vadd.f32 %v481, %v642
    %v675 = vadd.f32 %v482, %v643
    %v676 = vadd.f32 %v483, %v644
    %v677 = vadd.f32 %v484, %v645
    %v678 = vadd.f32 %v485, %v646
    %v679 = vadd.f32 %v486, %v647
    %v680 = vadd.f32 %v487, %v648
    %v681 = vadd.f32 %v488, %v649
    %v682 = vadd.f32 %v489, %v650
    %v683 = vadd.f32 %v490, %v651
    %v684 = vadd.f32 %v491, %v652
    %v685 = vadd.f32 %v492, %v653
    %v686 = vadd.f32 %v493, %v654
    %v687 = vadd.f32 %v494, %v655
    %v688 = vadd.f32 %v495, %v656
    %v689 = vadd.f32 %v496, %v657
    %v690 = vadd.f32 %v497, %v658
    %v691 = vadd.f32 %v498, %v659
    %v692 = vadd.f32 %v499, %v660
    %v693 = vadd.f32 %v500, %v661
    %v694 = vadd.f32 %v501, %v662
    %v695 = vadd.f32 %v502, %v663
    %v696 = vadd.f32 %v503, %v664
    %v697 = vadd.f32 %v504, %v665
    %698 = vset.pattern.permute.xlu0 3
    %699 = vperm.xlu0 %698, %v21
    %v700 = vpop.permute.xlu0 %699
    %702 = vset.pattern.permute.xlu0 3
    %703 = vperm.xlu0 %702, %v22
    %v704 = vpop.permute.xlu0 %703
    %706 = vset.pattern.permute.xlu0 3
    %707 = vperm.xlu0 %706, %v23
    %v708 = vpop.permute.xlu0 %707
    %710 = vset.pattern.permute.xlu0 3
    %711 = vperm.xlu0 %710, %v24
    %v712 = vpop.permute.xlu0 %711
    %714 = vset.pattern.permute.xlu0 3
    %715 = vperm.xlu0 %714, %v25
    %v716 = vpop.permute.xlu0 %715
    %718 = vset.pattern.permute.xlu0 3
    %719 = vperm.xlu0 %718, %v26
    %v720 = vpop.permute.xlu0 %719
    %722 = vset.pattern.permute.xlu0 3
    %723 = vperm.xlu0 %722, %v27
    %v724 = vpop.permute.xlu0 %723
    %726 = vset.pattern.permute.xlu0 3
    %727 = vperm.xlu0 %726, %v28
    %v728 = vpop.permute.xlu0 %727
    %730 = vset.pattern.permute.xlu0 3
    %731 = vperm.xlu0 %730, %v29
    %v732 = vpop.permute.xlu0 %731
    %734 = vset.pattern.permute.xlu0 3
    %735 = vperm.xlu0 %734, %v30
    %v736 = vpop.permute.xlu0 %735
    %738 = vset.pattern.permute.xlu0 3
    %739 = vperm.xlu0 %738, %v31
    %v740 = vpop.permute.xlu0 %739
    %742 = vset.pattern.permute.xlu0 3
    %743 = vperm.xlu0 %742, %v32
    %v744 = vpop.permute.xlu0 %743
    %746 = vset.pattern.permute.xlu0 3
    %747 = vperm.xlu0 %746, %v33
    %v748 = vpop.permute.xlu0 %747
    %750 = vset.pattern.permute.xlu0 3
    %751 = vperm.xlu0 %750, %v34
    %v752 = vpop.permute.xlu0 %751
    %754 = vset.pattern.permute.xlu0 3
    %755 = vperm.xlu0 %754, %v35
    %v756 = vpop.permute.xlu0 %755
    %758 = vset.pattern.permute.xlu0 3
    %759 = vperm.xlu0 %758, %v36
    %v760 = vpop.permute.xlu0 %759
    %762 = vset.pattern.permute.xlu0 3
    %763 = vperm.xlu0 %762, %v37
    %v764 = vpop.permute.xlu0 %763
    %766 = vset.pattern.permute.xlu0 3
    %767 = vperm.xlu0 %766, %v38
    %v768 = vpop.permute.xlu0 %767
    %770 = vset.pattern.permute.xlu0 3
    %771 = vperm.xlu0 %770, %v39
    %v772 = vpop.permute.xlu0 %771
    %774 = vset.pattern.permute.xlu0 3
    %775 = vperm.xlu0 %774, %v40
    %v776 = vpop.permute.xlu0 %775
    %778 = vset.pattern.permute.xlu0 3
    %779 = vperm.xlu0 %778, %v41
    %v780 = vpop.permute.xlu0 %779
    %782 = vset.pattern.permute.xlu0 3
    %783 = vperm.xlu0 %782, %v42
    %v784 = vpop.permute.xlu0 %783
    %786 = vset.pattern.permute.xlu0 3
    %787 = vperm.xlu0 %786, %v43
    %v788 = vpop.permute.xlu0 %787
    %790 = vset.pattern.permute.xlu0 3
    %791 = vperm.xlu0 %790, %v44
    %v792 = vpop.permute.xlu0 %791
    %794 = vset.pattern.permute.xlu0 3
    %795 = vperm.xlu0 %794, %v45
    %v796 = vpop.permute.xlu0 %795
    %798 = vset.pattern.permute.xlu0 3
    %799 = vperm.xlu0 %798, %v46
    %v800 = vpop.permute.xlu0 %799
    %802 = vset.pattern.permute.xlu0 3
    %803 = vperm.xlu0 %802, %v47
    %v804 = vpop.permute.xlu0 %803
    %806 = vset.pattern.permute.xlu0 3
    %807 = vperm.xlu0 %806, %v48
    %v808 = vpop.permute.xlu0 %807
    %810 = vset.pattern.permute.xlu0 3
    %811 = vperm.xlu0 %810, %v49
    %v812 = vpop.permute.xlu0 %811
    %814 = vset.pattern.permute.xlu0 3
    %815 = vperm.xlu0 %814, %v50
    %v816 = vpop.permute.xlu0 %815
    %818 = vset.pattern.permute.xlu0 3
    %819 = vperm.xlu0 %818, %v51
    %v820 = vpop.permute.xlu0 %819
    %822 = vset.pattern.permute.xlu0 3
    %823 = vperm.xlu0 %822, %v52
    %v824 = vpop.permute.xlu0 %823
    %v826 = vperm.slane %v85, 3
    %v827 = vmul.f32 %v700, %v826
    %v828 = vmul.f32 %v704, %v826
    %v829 = vmul.f32 %v708, %v826
    %v830 = vmul.f32 %v712, %v826
    %v831 = vmul.f32 %v716, %v826
    %v832 = vmul.f32 %v720, %v826
    %v833 = vmul.f32 %v724, %v826
    %v834 = vmul.f32 %v728, %v826
    %v835 = vmul.f32 %v732, %v826
    %v836 = vmul.f32 %v736, %v826
    %v837 = vmul.f32 %v740, %v826
    %v838 = vmul.f32 %v744, %v826
    %v839 = vmul.f32 %v748, %v826
    %v840 = vmul.f32 %v752, %v826
    %v841 = vmul.f32 %v756, %v826
    %v842 = vmul.f32 %v760, %v826
    %v843 = vmul.f32 %v764, %v826
    %v844 = vmul.f32 %v768, %v826
    %v845 = vmul.f32 %v772, %v826
    %v846 = vmul.f32 %v776, %v826
    %v847 = vmul.f32 %v780, %v826
    %v848 = vmul.f32 %v784, %v826
    %v849 = vmul.f32 %v788, %v826
    %v850 = vmul.f32 %v792, %v826
    %v851 = vmul.f32 %v796, %v826
    %v852 = vmul.f32 %v800, %v826
    %v853 = vmul.f32 %v804, %v826
    %v854 = vmul.f32 %v808, %v826
    %v855 = vmul.f32 %v812, %v826
    %v856 = vmul.f32 %v816, %v826
    %v857 = vmul.f32 %v820, %v826
    %v858 = vmul.f32 %v824, %v826
    %v859 = vadd.f32 %v666, %v827
    %v860 = vadd.f32 %v667, %v828
    %v861 = vadd.f32 %v668, %v829
    %v862 = vadd.f32 %v669, %v830
    %v863 = vadd.f32 %v670, %v831
    %v864 = vadd.f32 %v671, %v832
    %v865 = vadd.f32 %v672, %v833
    %v866 = vadd.f32 %v673, %v834
    %v867 = vadd.f32 %v674, %v835
    %v868 = vadd.f32 %v675, %v836
    %v869 = vadd.f32 %v676, %v837
    %v870 = vadd.f32 %v677, %v838
    %v871 = vadd.f32 %v678, %v839
    %v872 = vadd.f32 %v679, %v840
    %v873 = vadd.f32 %v680, %v841
    %v874 = vadd.f32 %v681, %v842
    %v875 = vadd.f32 %v682, %v843
    %v876 = vadd.f32 %v683, %v844
    %v877 = vadd.f32 %v684, %v845
    %v878 = vadd.f32 %v685, %v846
    %v879 = vadd.f32 %v686, %v847
    %v880 = vadd.f32 %v687, %v848
    %v881 = vadd.f32 %v688, %v849
    %v882 = vadd.f32 %v689, %v850
    %v883 = vadd.f32 %v690, %v851
    %v884 = vadd.f32 %v691, %v852
    %v885 = vadd.f32 %v692, %v853
    %v886 = vadd.f32 %v693, %v854
    %v887 = vadd.f32 %v694, %v855
    %v888 = vadd.f32 %v695, %v856
    %v889 = vadd.f32 %v696, %v857
    %v890 = vadd.f32 %v697, %v858
    %892 = vset.pattern.permute.xlu0 0
    %893 = vperm.xlu0 %892, %v53
    %v894 = vpop.permute.xlu0 %893
    %897 = vset.pattern.permute.xlu0 0
    %898 = vperm.xlu0 %897, %v54
    %v899 = vpop.permute.xlu0 %898
    %902 = vset.pattern.permute.xlu0 0
    %903 = vperm.xlu0 %902, %v55
    %v904 = vpop.permute.xlu0 %903
    %907 = vset.pattern.permute.xlu0 0
    %908 = vperm.xlu0 %907, %v56
    %v909 = vpop.permute.xlu0 %908
    %912 = vset.pattern.permute.xlu0 0
    %913 = vperm.xlu0 %912, %v57
    %v914 = vpop.permute.xlu0 %913
    %917 = vset.pattern.permute.xlu0 0
    %918 = vperm.xlu0 %917, %v58
    %v919 = vpop.permute.xlu0 %918
    %922 = vset.pattern.permute.xlu0 0
    %923 = vperm.xlu0 %922, %v59
    %v924 = vpop.permute.xlu0 %923
    %927 = vset.pattern.permute.xlu0 0
    %928 = vperm.xlu0 %927, %v60
    %v929 = vpop.permute.xlu0 %928
    %932 = vset.pattern.permute.xlu0 0
    %933 = vperm.xlu0 %932, %v61
    %v934 = vpop.permute.xlu0 %933
    %937 = vset.pattern.permute.xlu0 0
    %938 = vperm.xlu0 %937, %v62
    %v939 = vpop.permute.xlu0 %938
    %942 = vset.pattern.permute.xlu0 0
    %943 = vperm.xlu0 %942, %v63
    %v944 = vpop.permute.xlu0 %943
    %947 = vset.pattern.permute.xlu0 0
    %948 = vperm.xlu0 %947, %v64
    %v949 = vpop.permute.xlu0 %948
    %952 = vset.pattern.permute.xlu0 0
    %953 = vperm.xlu0 %952, %v65
    %v954 = vpop.permute.xlu0 %953
    %957 = vset.pattern.permute.xlu0 0
    %958 = vperm.xlu0 %957, %v66
    %v959 = vpop.permute.xlu0 %958
    %962 = vset.pattern.permute.xlu0 0
    %963 = vperm.xlu0 %962, %v67
    %v964 = vpop.permute.xlu0 %963
    %967 = vset.pattern.permute.xlu0 0
    %968 = vperm.xlu0 %967, %v68
    %v969 = vpop.permute.xlu0 %968
    %972 = vset.pattern.permute.xlu0 0
    %973 = vperm.xlu0 %972, %v69
    %v974 = vpop.permute.xlu0 %973
    %977 = vset.pattern.permute.xlu0 0
    %978 = vperm.xlu0 %977, %v70
    %v979 = vpop.permute.xlu0 %978
    %982 = vset.pattern.permute.xlu0 0
    %983 = vperm.xlu0 %982, %v71
    %v984 = vpop.permute.xlu0 %983
    %987 = vset.pattern.permute.xlu0 0
    %988 = vperm.xlu0 %987, %v72
    %v989 = vpop.permute.xlu0 %988
    %992 = vset.pattern.permute.xlu0 0
    %993 = vperm.xlu0 %992, %v73
    %v994 = vpop.permute.xlu0 %993
    %997 = vset.pattern.permute.xlu0 0
    %998 = vperm.xlu0 %997, %v74
    %v999 = vpop.permute.xlu0 %998
    %1002 = vset.pattern.permute.xlu0 0
    %1003 = vperm.xlu0 %1002, %v75
    %v1004 = vpop.permute.xlu0 %1003
    %1007 = vset.pattern.permute.xlu0 0
    %1008 = vperm.xlu0 %1007, %v76
    %v1009 = vpop.permute.xlu0 %1008
    %1012 = vset.pattern.permute.xlu0 0
    %1013 = vperm.xlu0 %1012, %v77
    %v1014 = vpop.permute.xlu0 %1013
    %1017 = vset.pattern.permute.xlu0 0
    %1018 = vperm.xlu0 %1017, %v78
    %v1019 = vpop.permute.xlu0 %1018
    %1022 = vset.pattern.permute.xlu0 0
    %1023 = vperm.xlu0 %1022, %v79
    %v1024 = vpop.permute.xlu0 %1023
    %1027 = vset.pattern.permute.xlu0 0
    %1028 = vperm.xlu0 %1027, %v80
    %v1029 = vpop.permute.xlu0 %1028
    %1032 = vset.pattern.permute.xlu0 0
    %1033 = vperm.xlu0 %1032, %v81
    %v1034 = vpop.permute.xlu0 %1033
    %1037 = vset.pattern.permute.xlu0 0
    %1038 = vperm.xlu0 %1037, %v82
    %v1039 = vpop.permute.xlu0 %1038
    %1042 = vset.pattern.permute.xlu0 0
    %1043 = vperm.xlu0 %1042, %v83
    %v1044 = vpop.permute.xlu0 %1043
    %1047 = vset.pattern.permute.xlu0 0
    %1048 = vperm.xlu0 %1047, %v84
    %v1049 = vpop.permute.xlu0 %1048
    %v1051 = vperm.slane %v85, 4
    %v1052 = vmul.f32 %v894, %v1051
    %v1053 = vmul.f32 %v899, %v1051
    %v1054 = vmul.f32 %v904, %v1051
    %v1055 = vmul.f32 %v909, %v1051
    %v1056 = vmul.f32 %v914, %v1051
    %v1057 = vmul.f32 %v919, %v1051
    %v1058 = vmul.f32 %v924, %v1051
    %v1059 = vmul.f32 %v929, %v1051
    %v1060 = vmul.f32 %v934, %v1051
    %v1061 = vmul.f32 %v939, %v1051
    %v1062 = vmul.f32 %v944, %v1051
    %v1063 = vmul.f32 %v949, %v1051
    %v1064 = vmul.f32 %v954, %v1051
    %v1065 = vmul.f32 %v959, %v1051
    %v1066 = vmul.f32 %v964, %v1051
    %v1067 = vmul.f32 %v969, %v1051
    %v1068 = vmul.f32 %v974, %v1051
    %v1069 = vmul.f32 %v979, %v1051
    %v1070 = vmul.f32 %v984, %v1051
    %v1071 = vmul.f32 %v989, %v1051
    %v1072 = vmul.f32 %v994, %v1051
    %v1073 = vmul.f32 %v999, %v1051
    %v1074 = vmul.f32 %v1004, %v1051
    %v1075 = vmul.f32 %v1009, %v1051
    %v1076 = vmul.f32 %v1014, %v1051
    %v1077 = vmul.f32 %v1019, %v1051
    %v1078 = vmul.f32 %v1024, %v1051
    %v1079 = vmul.f32 %v1029, %v1051
    %v1080 = vmul.f32 %v1034, %v1051
    %v1081 = vmul.f32 %v1039, %v1051
    %v1082 = vmul.f32 %v1044, %v1051
    %v1083 = vmul.f32 %v1049, %v1051
    %v1084 = vadd.f32 %v859, %v1052
    %v1085 = vadd.f32 %v860, %v1053
    %v1086 = vadd.f32 %v861, %v1054
    %v1087 = vadd.f32 %v862, %v1055
    %v1088 = vadd.f32 %v863, %v1056
    %v1089 = vadd.f32 %v864, %v1057
    %v1090 = vadd.f32 %v865, %v1058
    %v1091 = vadd.f32 %v866, %v1059
    %v1092 = vadd.f32 %v867, %v1060
    %v1093 = vadd.f32 %v868, %v1061
    %v1094 = vadd.f32 %v869, %v1062
    %v1095 = vadd.f32 %v870, %v1063
    %v1096 = vadd.f32 %v871, %v1064
    %v1097 = vadd.f32 %v872, %v1065
    %v1098 = vadd.f32 %v873, %v1066
    %v1099 = vadd.f32 %v874, %v1067
    %v1100 = vadd.f32 %v875, %v1068
    %v1101 = vadd.f32 %v876, %v1069
    %v1102 = vadd.f32 %v877, %v1070
    %v1103 = vadd.f32 %v878, %v1071
    %v1104 = vadd.f32 %v879, %v1072
    %v1105 = vadd.f32 %v880, %v1073
    %v1106 = vadd.f32 %v881, %v1074
    %v1107 = vadd.f32 %v882, %v1075
    %v1108 = vadd.f32 %v883, %v1076
    %v1109 = vadd.f32 %v884, %v1077
    %v1110 = vadd.f32 %v885, %v1078
    %v1111 = vadd.f32 %v886, %v1079
    %v1112 = vadd.f32 %v887, %v1080
    %v1113 = vadd.f32 %v888, %v1081
    %v1114 = vadd.f32 %v889, %v1082
    %v1115 = vadd.f32 %v890, %v1083
    %v1116 = vmax.f32 %v1084, 0.0
    %v1117 = vmax.f32 %v1085, 0.0
    %v1118 = vmax.f32 %v1086, 0.0
    %v1119 = vmax.f32 %v1087, 0.0
    %v1120 = vmax.f32 %v1088, 0.0
    %v1121 = vmax.f32 %v1089, 0.0
    %v1122 = vmax.f32 %v1090, 0.0
    %v1123 = vmax.f32 %v1091, 0.0
    %v1124 = vmax.f32 %v1092, 0.0
    %v1125 = vmax.f32 %v1093, 0.0
    %v1126 = vmax.f32 %v1094, 0.0
    %v1127 = vmax.f32 %v1095, 0.0
    %v1128 = vmax.f32 %v1096, 0.0
    %v1129 = vmax.f32 %v1097, 0.0
    %v1130 = vmax.f32 %v1098, 0.0
    %v1131 = vmax.f32 %v1099, 0.0
    %v1132 = vmax.f32 %v1100, 0.0
    %v1133 = vmax.f32 %v1101, 0.0
    %v1134 = vmax.f32 %v1102, 0.0
    %v1135 = vmax.f32 %v1103, 0.0
    %v1136 = vmax.f32 %v1104, 0.0
    %v1137 = vmax.f32 %v1105, 0.0
    %v1138 = vmax.f32 %v1106, 0.0
    %v1139 = vmax.f32 %v1107, 0.0
    %v1140 = vmax.f32 %v1108, 0.0
    %v1141 = vmax.f32 %v1109, 0.0
    %v1142 = vmax.f32 %v1110, 0.0
    %v1143 = vmax.f32 %v1111, 0.0
    %v1144 = vmax.f32 %v1112, 0.0
    %v1145 = vmax.f32 %v1113, 0.0
    %v1146 = vmax.f32 %v1114, 0.0
    %v1147 = vmax.f32 %v1115, 0.0
    %v1148 = vld [vmem:[%s3] sm:$0xff]
    %v1149 = vld [vmem:[%s3 + $0x8] sm:$0xff]
    %v1150 = vld [vmem:[%s3 + $0x10] sm:$0xff]
    %v1151 = vld [vmem:[%s3 + $0x18] sm:$0xff]
    %v1152 = vld [vmem:[%s3 + $0x20] sm:$0xff]
    %v1153 = vld [vmem:[%s3 + $0x28] sm:$0xff]
    %v1154 = vld [vmem:[%s3 + $0x30] sm:$0xff]
    %v1155 = vld [vmem:[%s3 + $0x38] sm:$0xff]
    %v1156 = vld [vmem:[%s3 + $0x40] sm:$0xff]
    %v1157 = vld [vmem:[%s3 + $0x48] sm:$0xff]
    %v1158 = vld [vmem:[%s3 + $0x50] sm:$0xff]
    %v1159 = vld [vmem:[%s3 + $0x58] sm:$0xff]
    %v1160 = vld [vmem:[%s3 + $0x60] sm:$0xff]
    %v1161 = vld [vmem:[%s3 + $0x68] sm:$0xff]
    %v1162 = vld [vmem:[%s3 + $0x70] sm:$0xff]
    %v1163 = vld [vmem:[%s3 + $0x78] sm:$0xff]
    %v1164 = vld [vmem:[%s3 + $0x80] sm:$0x1]
    %v1165 = vperm.slane %v1164, 0
    %1166 = vmatpush.msra.mxu0 %v1163
    %1167 = vmatpush.msra.mxu0 %v1162
    %1168 = vmatpush.msra.mxu0 %v1161
    %1169 = vmatpush.msra.mxu0 %v1160
    %1170 = vmatpush.msra.mxu0 %v1159
    %1171 = vmatpush.msra.mxu0 %v1158
    %1172 = vmatpush.msra.mxu0 %v1157
    %1173 = vmatpush.msra.mxu0 %v1156
    %1174 = vmatpush.msra.mxu0 %v1155
    %1175 = vmatpush.msra.mxu0 %v1154
    %1176 = vmatpush.msra.mxu0 %v1153
    %1177 = vmatpush.msra.mxu0 %v1152
    %1178 = vmatpush.msra.mxu0 %v1151
    %1179 = vmatpush.msra.mxu0 %v1150
    %1180 = vmatpush.msra.mxu0 %v1149
    %1181 = vmatpush.msra.mxu0 %v1148
    %1182 = vmatmul.f32.gmra.mxu0 %v1116
    %v1183 = vpop.f32.mrf.mxu0
    %v1184 = vadd.f32 %v1165, %v1183
    %1185 = vmatmul.f32.gmra.mxu0 %v1117
    %v1186 = vpop.f32.mrf.mxu0
    %v1187 = vadd.f32 %v1165, %v1186
    %1188 = vmatmul.f32.gmra.mxu0 %v1118
    %v1189 = vpop.f32.mrf.mxu0
    %v1190 = vadd.f32 %v1165, %v1189
    %1191 = vmatmul.f32.gmra.mxu0 %v1119
    %v1192 = vpop.f32.mrf.mxu0
    %v1193 = vadd.f32 %v1165, %v1192
    %1194 = vmatmul.f32.gmra.mxu0 %v1120
    %v1195 = vpop.f32.mrf.mxu0
    %v1196 = vadd.f32 %v1165, %v1195
    %1197 = vmatmul.f32.gmra.mxu0 %v1121
    %v1198 = vpop.f32.mrf.mxu0
    %v1199 = vadd.f32 %v1165, %v1198
    %1200 = vmatmul.f32.gmra.mxu0 %v1122
    %v1201 = vpop.f32.mrf.mxu0
    %v1202 = vadd.f32 %v1165, %v1201
    %1203 = vmatmul.f32.gmra.mxu0 %v1123
    %v1204 = vpop.f32.mrf.mxu0
    %v1205 = vadd.f32 %v1165, %v1204
    %1206 = vmatmul.f32.gmra.mxu0 %v1124
    %v1207 = vpop.f32.mrf.mxu0
    %v1208 = vadd.f32 %v1165, %v1207
    %1209 = vmatmul.f32.gmra.mxu0 %v1125
    %v1210 = vpop.f32.mrf.mxu0
    %v1211 = vadd.f32 %v1165, %v1210
    %1212 = vmatmul.f32.gmra.mxu0 %v1126
    %v1213 = vpop.f32.mrf.mxu0
    %v1214 = vadd.f32 %v1165, %v1213
    %1215 = vmatmul.f32.gmra.mxu0 %v1127
    %v1216 = vpop.f32.mrf.mxu0
    %v1217 = vadd.f32 %v1165, %v1216
    %1218 = vmatmul.f32.gmra.mxu0 %v1128
    %v1219 = vpop.f32.mrf.mxu0
    %v1220 = vadd.f32 %v1165, %v1219
    %1221 = vmatmul.f32.gmra.mxu0 %v1129
    %v1222 = vpop.f32.mrf.mxu0
    %v1223 = vadd.f32 %v1165, %v1222
    %1224 = vmatmul.f32.gmra.mxu0 %v1130
    %v1225 = vpop.f32.mrf.mxu0
    %v1226 = vadd.f32 %v1165, %v1225
    %1227 = vmatmul.f32.gmra.mxu0 %v1131
    %v1228 = vpop.f32.mrf.mxu0
    %v1229 = vadd.f32 %v1165, %v1228
    %1230 = vmatmul.f32.gmra.mxu0 %v1132
    %v1231 = vpop.f32.mrf.mxu0
    %v1232 = vadd.f32 %v1165, %v1231
    %1233 = vmatmul.f32.gmra.mxu0 %v1133
    %v1234 = vpop.f32.mrf.mxu0
    %v1235 = vadd.f32 %v1165, %v1234
    %1236 = vmatmul.f32.gmra.mxu0 %v1134
    %v1237 = vpop.f32.mrf.mxu0
    %v1238 = vadd.f32 %v1165, %v1237
    %1239 = vmatmul.f32.gmra.mxu0 %v1135
    %v1240 = vpop.f32.mrf.mxu0
    %v1241 = vadd.f32 %v1165, %v1240
    %1242 = vmatmul.f32.gmra.mxu0 %v1136
    %v1243 = vpop.f32.mrf.mxu0
    %v1244 = vadd.f32 %v1165, %v1243
    %1245 = vmatmul.f32.gmra.mxu0 %v1137
    %v1246 = vpop.f32.mrf.mxu0
    %v1247 = vadd.f32 %v1165, %v1246
    %1248 = vmatmul.f32.gmra.mxu0 %v1138
    %v1249 = vpop.f32.mrf.mxu0
    %v1250 = vadd.f32 %v1165, %v1249
    %1251 = vmatmul.f32.gmra.mxu0 %v1139
    %v1252 = vpop.f32.mrf.mxu0
    %v1253 = vadd.f32 %v1165, %v1252
    %1254 = vmatmul.f32.gmra.mxu0 %v1140
    %v1255 = vpop.f32.mrf.mxu0
    %v1256 = vadd.f32 %v1165, %v1255
    %1257 = vmatmul.f32.gmra.mxu0 %v1141
    %v1258 = vpop.f32.mrf.mxu0
    %v1259 = vadd.f32 %v1165, %v1258
    %1260 = vmatmul.f32.gmra.mxu0 %v1142
    %v1261 = vpop.f32.mrf.mxu0
    %v1262 = vadd.f32 %v1165, %v1261
    %1263 = vmatmul.f32.gmra.mxu0 %v1143
    %v1264 = vpop.f32.mrf.mxu0
    %v1265 = vadd.f32 %v1165, %v1264
    %1266 = vmatmul.f32.gmra.mxu0 %v1144
    %v1267 = vpop.f32.mrf.mxu0
    %v1268 = vadd.f32 %v1165, %v1267
    %1269 = vmatmul.f32.gmra.mxu0 %v1145
    %v1270 = vpop.f32.mrf.mxu0
    %v1271 = vadd.f32 %v1165, %v1270
    %1272 = vmatmul.f32.gmra.mxu0 %v1146
    %v1273 = vpop.f32.mrf.mxu0
    %v1274 = vadd.f32 %v1165, %v1273
    %1275 = vmatmul.f32.gmra.mxu0 %v1147
    %v1276 = vpop.f32.mrf.mxu0
    %v1277 = vadd.f32 %v1165, %v1276
    %1278 = vdwg.mxu0
    %v1279 = vmax.f32 %v1184, 0.0
    %v1280 = vmax.f32 %v1187, 0.0
    %v1281 = vmax.f32 %v1190, 0.0
    %v1282 = vmax.f32 %v1193, 0.0
    %v1283 = vmax.f32 %v1196, 0.0
    %v1284 = vmax.f32 %v1199, 0.0
    %v1285 = vmax.f32 %v1202, 0.0
    %v1286 = vmax.f32 %v1205, 0.0
    %v1287 = vmax.f32 %v1208, 0.0
    %v1288 = vmax.f32 %v1211, 0.0
    %v1289 = vmax.f32 %v1214, 0.0
    %v1290 = vmax.f32 %v1217, 0.0
    %v1291 = vmax.f32 %v1220, 0.0
    %v1292 = vmax.f32 %v1223, 0.0
    %v1293 = vmax.f32 %v1226, 0.0
    %v1294 = vmax.f32 %v1229, 0.0
    %v1295 = vmax.f32 %v1232, 0.0
    %v1296 = vmax.f32 %v1235, 0.0
    %v1297 = vmax.f32 %v1238, 0.0
    %v1298 = vmax.f32 %v1241, 0.0
    %v1299 = vmax.f32 %v1244, 0.0
    %v1300 = vmax.f32 %v1247, 0.0
    %v1301 = vmax.f32 %v1250, 0.0
    %v1302 = vmax.f32 %v1253, 0.0
    %v1303 = vmax.f32 %v1256, 0.0
    %v1304 = vmax.f32 %v1259, 0.0
    %v1305 = vmax.f32 %v1262, 0.0
    %v1306 = vmax.f32 %v1265, 0.0
    %v1307 = vmax.f32 %v1268, 0.0
    %v1308 = vmax.f32 %v1271, 0.0
    %v1309 = vmax.f32 %v1274, 0.0
    %v1310 = vmax.f32 %v1277, 0.0
    %v1311 = vld [vmem:[%s4] sm:$0x1]
    %v1312 = vld [vmem:[%s4 + $0x1] sm:$0x1]
    %v1313 = vperm.slane %v1311, 0
    %v1314 = vmul.f32 %v1279, %v1313
    %v1315 = vmul.f32 %v1280, %v1313
    %v1316 = vmul.f32 %v1281, %v1313
    %v1317 = vmul.f32 %v1282, %v1313
    %v1318 = vmul.f32 %v1283, %v1313
    %v1319 = vmul.f32 %v1284, %v1313
    %v1320 = vmul.f32 %v1285, %v1313
    %v1321 = vmul.f32 %v1286, %v1313
    %v1322 = vmul.f32 %v1287, %v1313
    %v1323 = vmul.f32 %v1288, %v1313
    %v1324 = vmul.f32 %v1289, %v1313
    %v1325 = vmul.f32 %v1290, %v1313
    %v1326 = vmul.f32 %v1291, %v1313
    %v1327 = vmul.f32 %v1292, %v1313
    %v1328 = vmul.f32 %v1293, %v1313
    %v1329 = vmul.f32 %v1294, %v1313
    %v1330 = vmul.f32 %v1295, %v1313
    %v1331 = vmul.f32 %v1296, %v1313
    %v1332 = vmul.f32 %v1297, %v1313
    %v1333 = vmul.f32 %v1298, %v1313
    %v1334 = vmul.f32 %v1299, %v1313
    %v1335 = vmul.f32 %v1300, %v1313
    %v1336 = vmul.f32 %v1301, %v1313
    %v1337 = vmul.f32 %v1302, %v1313
    %v1338 = vmul.f32 %v1303, %v1313
    %v1339 = vmul.f32 %v1304, %v1313
    %v1340 = vmul.f32 %v1305, %v1313
    %v1341 = vmul.f32 %v1306, %v1313
    %v1342 = vmul.f32 %v1307, %v1313
    %v1343 = vmul.f32 %v1308, %v1313
    %v1344 = vmul.f32 %v1309, %v1313
    %v1345 = vmul.f32 %v1310, %v1313
    %1346 = vadd.xlane.f32.xlu0 %v1314
    %v1347 = vpop.xlane.xlu0 %1346
    %1348 = vadd.xlane.f32.xlu0 %v1315
    %v1349 = vpop.xlane.xlu0 %1348
    %1350 = vadd.xlane.f32.xlu0 %v1316
    %v1351 = vpop.xlane.xlu0 %1350
    %1352 = vadd.xlane.f32.xlu0 %v1317
    %v1353 = vpop.xlane.xlu0 %1352
    %1354 = vadd.xlane.f32.xlu0 %v1318
    %v1355 = vpop.xlane.xlu0 %1354
    %1356 = vadd.xlane.f32.xlu0 %v1319
    %v1357 = vpop.xlane.xlu0 %1356
    %1358 = vadd.xlane.f32.xlu0 %v1320
    %v1359 = vpop.xlane.xlu0 %1358
    %1360 = vadd.xlane.f32.xlu0 %v1321
    %v1361 = vpop.xlane.xlu0 %1360
    %1362 = vadd.xlane.f32.xlu0 %v1322
    %v1363 = vpop.xlane.xlu0 %1362
    %1364 = vadd.xlane.f32.xlu0 %v1323
    %v1365 = vpop.xlane.xlu0 %1364
    %1366 = vadd.xlane.f32.xlu0 %v1324
    %v1367 = vpop.xlane.xlu0 %1366
    %1368 = vadd.xlane.f32.xlu0 %v1325
    %v1369 = vpop.xlane.xlu0 %1368
    %1370 = vadd.xlane.f32.xlu0 %v1326
    %v1371 = vpop.xlane.xlu0 %1370
    %1372 = vadd.xlane.f32.xlu0 %v1327
    %v1373 = vpop.xlane.xlu0 %1372
    %1374 = vadd.xlane.f32.xlu0 %v1328
    %v1375 = vpop.xlane.xlu0 %1374
    %1376 = vadd.xlane.f32.xlu0 %v1329
    %v1377 = vpop.xlane.xlu0 %1376
    %1378 = vadd.xlane.f32.xlu0 %v1330
    %v1379 = vpop.xlane.xlu0 %1378
    %1380 = vadd.xlane.f32.xlu0 %v1331
    %v1381 = vpop.xlane.xlu0 %1380
    %1382 = vadd.xlane.f32.xlu0 %v1332
    %v1383 = vpop.xlane.xlu0 %1382
    %1384 = vadd.xlane.f32.xlu0 %v1333
    %v1385 = vpop.xlane.xlu0 %1384
    %1386 = vadd.xlane.f32.xlu0 %v1334
    %v1387 = vpop.xlane.xlu0 %1386
    %1388 = vadd.xlane.f32.xlu0 %v1335
    %v1389 = vpop.xlane.xlu0 %1388
    %1390 = vadd.xlane.f32.xlu0 %v1336
    %v1391 = vpop.xlane.xlu0 %1390
    %1392 = vadd.xlane.f32.xlu0 %v1337
    %v1393 = vpop.xlane.xlu0 %1392
    %1394 = vadd.xlane.f32.xlu0 %v1338
    %v1395 = vpop.xlane.xlu0 %1394
    %1396 = vadd.xlane.f32.xlu0 %v1339
    %v1397 = vpop.xlane.xlu0 %1396
    %1398 = vadd.xlane.f32.xlu0 %v1340
    %v1399 = vpop.xlane.xlu0 %1398
    %1400 = vadd.xlane.f32.xlu0 %v1341
    %v1401 = vpop.xlane.xlu0 %1400
    %1402 = vadd.xlane.f32.xlu0 %v1342
    %v1403 = vpop.xlane.xlu0 %1402
    %1404 = vadd.xlane.f32.xlu0 %v1343
    %v1405 = vpop.xlane.xlu0 %1404
    %1406 = vadd.xlane.f32.xlu0 %v1344
    %v1407 = vpop.xlane.xlu0 %1406
    %1408 = vadd.xlane.f32.xlu0 %v1345
    %v1409 = vpop.xlane.xlu0 %1408
    %1411 = vset.pattern.permute.xlu0 0
    %1412 = vperm.xlu0 %1411, %v1312
    %v1413 = vpop.permute.xlu0 %1412
    %v1414 = vperm.slane %v1413, 0
    %v1416 = vadd.f32 %v1347, %v1414
    %v1417 = vadd.f32 %v1349, %v1414
    %v1418 = vadd.f32 %v1351, %v1414
    %v1419 = vadd.f32 %v1353, %v1414
    %v1420 = vadd.f32 %v1355, %v1414
    %v1421 = vadd.f32 %v1357, %v1414
    %v1422 = vadd.f32 %v1359, %v1414
    %v1423 = vadd.f32 %v1361, %v1414
    %v1424 = vadd.f32 %v1363, %v1414
    %v1425 = vadd.f32 %v1365, %v1414
    %v1426 = vadd.f32 %v1367, %v1414
    %v1427 = vadd.f32 %v1369, %v1414
    %v1428 = vadd.f32 %v1371, %v1414
    %v1429 = vadd.f32 %v1373, %v1414
    %v1430 = vadd.f32 %v1375, %v1414
    %v1431 = vadd.f32 %v1377, %v1414
    %v1432 = vadd.f32 %v1379, %v1414
    %v1433 = vadd.f32 %v1381, %v1414
    %v1434 = vadd.f32 %v1383, %v1414
    %v1435 = vadd.f32 %v1385, %v1414
    %v1436 = vadd.f32 %v1387, %v1414
    %v1437 = vadd.f32 %v1389, %v1414
    %v1438 = vadd.f32 %v1391, %v1414
    %v1439 = vadd.f32 %v1393, %v1414
    %v1440 = vadd.f32 %v1395, %v1414
    %v1441 = vadd.f32 %v1397, %v1414
    %v1442 = vadd.f32 %v1399, %v1414
    %v1443 = vadd.f32 %v1401, %v1414
    %v1444 = vadd.f32 %v1403, %v1414
    %v1445 = vadd.f32 %v1405, %v1414
    %v1446 = vadd.f32 %v1407, %v1414
    %v1447 = vadd.f32 %v1409, %v1414
    %v1480 = vrot.slane %v1416, 1
    %v1481 = vrot.slane %v1416, 2
    %v1482 = vrot.slane %v1416, 3
    %v1483 = vrot.slane %v1416, 4
    %v1484 = vrot.slane %v1416, 5
    %v1485 = vrot.slane %v1416, 6
    %v1486 = vrot.slane %v1416, 7
    %v1487 = vrot.slane %v1417, 1
    %v1488 = vrot.slane %v1417, 2
    %v1489 = vrot.slane %v1417, 3
    %v1490 = vrot.slane %v1417, 4
    %v1491 = vrot.slane %v1417, 5
    %v1492 = vrot.slane %v1417, 6
    %v1493 = vrot.slane %v1417, 7
    %v1494 = vrot.slane %v1418, 1
    %v1495 = vrot.slane %v1418, 2
    %v1496 = vrot.slane %v1418, 3
    %v1497 = vrot.slane %v1418, 4
    %v1498 = vrot.slane %v1418, 5
    %v1499 = vrot.slane %v1418, 6
    %v1500 = vrot.slane %v1418, 7
    %v1501 = vrot.slane %v1419, 1
    %v1502 = vrot.slane %v1419, 2
    %v1503 = vrot.slane %v1419, 3
    %v1504 = vrot.slane %v1419, 4
    %v1505 = vrot.slane %v1419, 5
    %v1506 = vrot.slane %v1419, 6
    %v1507 = vrot.slane %v1419, 7
    %v1508 = vrot.slane %v1420, 1
    %v1509 = vrot.slane %v1420, 2
    %v1510 = vrot.slane %v1420, 3
    %v1511 = vrot.slane %v1420, 4
    %v1512 = vrot.slane %v1420, 5
    %v1513 = vrot.slane %v1420, 6
    %v1514 = vrot.slane %v1420, 7
    %v1515 = vrot.slane %v1421, 1
    %v1516 = vrot.slane %v1421, 2
    %v1517 = vrot.slane %v1421, 3
    %v1518 = vrot.slane %v1421, 4
    %v1519 = vrot.slane %v1421, 5
    %v1520 = vrot.slane %v1421, 6
    %v1521 = vrot.slane %v1421, 7
    %v1522 = vrot.slane %v1422, 1
    %v1523 = vrot.slane %v1422, 2
    %v1524 = vrot.slane %v1422, 3
    %v1525 = vrot.slane %v1422, 4
    %v1526 = vrot.slane %v1422, 5
    %v1527 = vrot.slane %v1422, 6
    %v1528 = vrot.slane %v1422, 7
    %v1529 = vrot.slane %v1423, 1
    %v1530 = vrot.slane %v1423, 2
    %v1531 = vrot.slane %v1423, 3
    %v1532 = vrot.slane %v1423, 4
    %v1533 = vrot.slane %v1423, 5
    %v1534 = vrot.slane %v1423, 6
    %v1535 = vrot.slane %v1423, 7
    %v1536 = vrot.slane %v1424, 1
    %v1537 = vrot.slane %v1424, 2
    %v1538 = vrot.slane %v1424, 3
    %v1539 = vrot.slane %v1424, 4
    %v1540 = vrot.slane %v1424, 5
    %v1541 = vrot.slane %v1424, 6
    %v1542 = vrot.slane %v1424, 7
    %v1543 = vrot.slane %v1425, 1
    %v1544 = vrot.slane %v1425, 2
    %v1545 = vrot.slane %v1425, 3
    %v1546 = vrot.slane %v1425, 4
    %v1547 = vrot.slane %v1425, 5
    %v1548 = vrot.slane %v1425, 6
    %v1549 = vrot.slane %v1425, 7
    %v1550 = vrot.slane %v1426, 1
    %v1551 = vrot.slane %v1426, 2
    %v1552 = vrot.slane %v1426, 3
    %v1553 = vrot.slane %v1426, 4
    %v1554 = vrot.slane %v1426, 5
    %v1555 = vrot.slane %v1426, 6
    %v1556 = vrot.slane %v1426, 7
    %v1557 = vrot.slane %v1427, 1
    %v1558 = vrot.slane %v1427, 2
    %v1559 = vrot.slane %v1427, 3
    %v1560 = vrot.slane %v1427, 4
    %v1561 = vrot.slane %v1427, 5
    %v1562 = vrot.slane %v1427, 6
    %v1563 = vrot.slane %v1427, 7
    %v1564 = vrot.slane %v1428, 1
    %v1565 = vrot.slane %v1428, 2
    %v1566 = vrot.slane %v1428, 3
    %v1567 = vrot.slane %v1428, 4
    %v1568 = vrot.slane %v1428, 5
    %v1569 = vrot.slane %v1428, 6
    %v1570 = vrot.slane %v1428, 7
    %v1571 = vrot.slane %v1429, 1
    %v1572 = vrot.slane %v1429, 2
    %v1573 = vrot.slane %v1429, 3
    %v1574 = vrot.slane %v1429, 4
    %v1575 = vrot.slane %v1429, 5
    %v1576 = vrot.slane %v1429, 6
    %v1577 = vrot.slane %v1429, 7
    %v1578 = vrot.slane %v1430, 1
    %v1579 = vrot.slane %v1430, 2
    %v1580 = vrot.slane %v1430, 3
    %v1581 = vrot.slane %v1430, 4
    %v1582 = vrot.slane %v1430, 5
    %v1583 = vrot.slane %v1430, 6
    %v1584 = vrot.slane %v1430, 7
    %v1585 = vrot.slane %v1431, 1
    %v1586 = vrot.slane %v1431, 2
    %v1587 = vrot.slane %v1431, 3
    %v1588 = vrot.slane %v1431, 4
    %v1589 = vrot.slane %v1431, 5
    %v1590 = vrot.slane %v1431, 6
    %v1591 = vrot.slane %v1431, 7
    %v1592 = vrot.slane %v1432, 1
    %v1593 = vrot.slane %v1432, 2
    %v1594 = vrot.slane %v1432, 3
    %v1595 = vrot.slane %v1432, 4
    %v1596 = vrot.slane %v1432, 5
    %v1597 = vrot.slane %v1432, 6
    %v1598 = vrot.slane %v1432, 7
    %v1599 = vrot.slane %v1433, 1
    %v1600 = vrot.slane %v1433, 2
    %v1601 = vrot.slane %v1433, 3
    %v1602 = vrot.slane %v1433, 4
    %v1603 = vrot.slane %v1433, 5
    %v1604 = vrot.slane %v1433, 6
    %v1605 = vrot.slane %v1433, 7
    %v1606 = vrot.slane %v1434, 1
    %v1607 = vrot.slane %v1434, 2
    %v1608 = vrot.slane %v1434, 3
    %v1609 = vrot.slane %v1434, 4
    %v1610 = vrot.slane %v1434, 5
    %v1611 = vrot.slane %v1434, 6
    %v1612 = vrot.slane %v1434, 7
    %v1613 = vrot.slane %v1435, 1
    %v1614 = vrot.slane %v1435, 2
    %v1615 = vrot.slane %v1435, 3
    %v1616 = vrot.slane %v1435, 4
    %v1617 = vrot.slane %v1435, 5
    %v1618 = vrot.slane %v1435, 6
    %v1619 = vrot.slane %v1435, 7
    %v1620 = vrot.slane %v1436, 1
    %v1621 = vrot.slane %v1436, 2
    %v1622 = vrot.slane %v1436, 3
    %v1623 = vrot.slane %v1436, 4
    %v1624 = vrot.slane %v1436, 5
    %v1625 = vrot.slane %v1436, 6
    %v1626 = vrot.slane %v1436, 7
    %v1627 = vrot.slane %v1437, 1
    %v1628 = vrot.slane %v1437, 2
    %v1629 = vrot.slane %v1437, 3
    %v1630 = vrot.slane %v1437, 4
    %v1631 = vrot.slane %v1437, 5
    %v1632 = vrot.slane %v1437, 6
    %v1633 = vrot.slane %v1437, 7
    %v1634 = vrot.slane %v1438, 1
    %v1635 = vrot.slane %v1438, 2
    %v1636 = vrot.slane %v1438, 3
    %v1637 = vrot.slane %v1438, 4
    %v1638 = vrot.slane %v1438, 5
    %v1639 = vrot.slane %v1438, 6
    %v1640 = vrot.slane %v1438, 7
    %v1641 = vrot.slane %v1439, 1
    %v1642 = vrot.slane %v1439, 2
    %v1643 = vrot.slane %v1439, 3
    %v1644 = vrot.slane %v1439, 4
    %v1645 = vrot.slane %v1439, 5
    %v1646 = vrot.slane %v1439, 6
    %v1647 = vrot.slane %v1439, 7
    %v1648 = vrot.slane %v1440, 1
    %v1649 = vrot.slane %v1440, 2
    %v1650 = vrot.slane %v1440, 3
    %v1651 = vrot.slane %v1440, 4
    %v1652 = vrot.slane %v1440, 5
    %v1653 = vrot.slane %v1440, 6
    %v1654 = vrot.slane %v1440, 7
    %v1655 = vrot.slane %v1441, 1
    %v1656 = vrot.slane %v1441, 2
    %v1657 = vrot.slane %v1441, 3
    %v1658 = vrot.slane %v1441, 4
    %v1659 = vrot.slane %v1441, 5
    %v1660 = vrot.slane %v1441, 6
    %v1661 = vrot.slane %v1441, 7
    %v1662 = vrot.slane %v1442, 1
    %v1663 = vrot.slane %v1442, 2
    %v1664 = vrot.slane %v1442, 3
    %v1665 = vrot.slane %v1442, 4
    %v1666 = vrot.slane %v1442, 5
    %v1667 = vrot.slane %v1442, 6
    %v1668 = vrot.slane %v1442, 7
    %v1669 = vrot.slane %v1443, 1
    %v1670 = vrot.slane %v1443, 2
    %v1671 = vrot.slane %v1443, 3
    %v1672 = vrot.slane %v1443, 4
    %v1673 = vrot.slane %v1443, 5
    %v1674 = vrot.slane %v1443, 6
    %v1675 = vrot.slane %v1443, 7
    %v1676 = vrot.slane %v1444, 1
    %v1677 = vrot.slane %v1444, 2
    %v1678 = vrot.slane %v1444, 3
    %v1679 = vrot.slane %v1444, 4
    %v1680 = vrot.slane %v1444, 5
    %v1681 = vrot.slane %v1444, 6
    %v1682 = vrot.slane %v1444, 7
    %v1683 = vrot.slane %v1445, 1
    %v1684 = vrot.slane %v1445, 2
    %v1685 = vrot.slane %v1445, 3
    %v1686 = vrot.slane %v1445, 4
    %v1687 = vrot.slane %v1445, 5
    %v1688 = vrot.slane %v1445, 6
    %v1689 = vrot.slane %v1445, 7
    %v1690 = vrot.slane %v1446, 1
    %v1691 = vrot.slane %v1446, 2
    %v1692 = vrot.slane %v1446, 3
    %v1693 = vrot.slane %v1446, 4
    %v1694 = vrot.slane %v1446, 5
    %v1695 = vrot.slane %v1446, 6
    %v1696 = vrot.slane %v1446, 7
    %v1697 = vrot.slane %v1447, 1
    %v1698 = vrot.slane %v1447, 2
    %v1699 = vrot.slane %v1447, 3
    %v1700 = vrot.slane %v1447, 4
    %v1701 = vrot.slane %v1447, 5
    %v1702 = vrot.slane %v1447, 6
    %v1703 = vrot.slane %v1447, 7
    %1704 = vst [vmem:[#allocation1] ss:$9 sm:$0xff] %v1416
    %s1705 = scalar_lea.vmem [#allocation1], 1
    %1706 = vst [vmem:[%s1705] ss:$9 sm:$0xff] %v1480
    %s1707 = scalar_lea.vmem [#allocation1], 2
    %1708 = vst [vmem:[%s1707] ss:$9 sm:$0xff] %v1481
    %s1709 = scalar_lea.vmem [#allocation1], 3
    %1710 = vst [vmem:[%s1709] ss:$9 sm:$0xff] %v1482
    %s1711 = scalar_lea.vmem [#allocation1], 4
    %1712 = vst [vmem:[%s1711] ss:$9 sm:$0xff] %v1483
    %s1713 = scalar_lea.vmem [#allocation1], 5
    %1714 = vst [vmem:[%s1713] ss:$9 sm:$0xff] %v1484
    %s1715 = scalar_lea.vmem [#allocation1], 6
    %1716 = vst [vmem:[%s1715] ss:$9 sm:$0xff] %v1485
    %s1717 = scalar_lea.vmem [#allocation1], 7
    %1718 = vst [vmem:[%s1717] ss:$9 sm:$0xff] %v1486
    %v1719 = vld [vmem:[#allocation1] sm:$0xff]
    %1720 = vst [vmem:[#allocation1] ss:$9 sm:$0xff] %v1417
    %1721 = vst [vmem:[%s1705] ss:$9 sm:$0xff] %v1487
    %1722 = vst [vmem:[%s1707] ss:$9 sm:$0xff] %v1488
    %1723 = vst [vmem:[%s1709] ss:$9 sm:$0xff] %v1489
    %1724 = vst [vmem:[%s1711] ss:$9 sm:$0xff] %v1490
    %1725 = vst [vmem:[%s1713] ss:$9 sm:$0xff] %v1491
    %1726 = vst [vmem:[%s1715] ss:$9 sm:$0xff] %v1492
    %1727 = vst [vmem:[%s1717] ss:$9 sm:$0xff] %v1493
    %v1728 = vld [vmem:[#allocation1] sm:$0xff]
    %1729 = vst [vmem:[#allocation1] ss:$9 sm:$0xff] %v1418
    %1730 = vst [vmem:[%s1705] ss:$9 sm:$0xff] %v1494
    %1731 = vst [vmem:[%s1707] ss:$9 sm:$0xff] %v1495
    %1732 = vst [vmem:[%s1709] ss:$9 sm:$0xff] %v1496
    %1733 = vst [vmem:[%s1711] ss:$9 sm:$0xff] %v1497
    %1734 = vst [vmem:[%s1713] ss:$9 sm:$0xff] %v1498
    %1735 = vst [vmem:[%s1715] ss:$9 sm:$0xff] %v1499
    %1736 = vst [vmem:[%s1717] ss:$9 sm:$0xff] %v1500
    %v1737 = vld [vmem:[#allocation1] sm:$0xff]
    %1738 = vst [vmem:[#allocation1] ss:$9 sm:$0xff] %v1419
    %1739 = vst [vmem:[%s1705] ss:$9 sm:$0xff] %v1501
    %1740 = vst [vmem:[%s1707] ss:$9 sm:$0xff] %v1502
    %1741 = vst [vmem:[%s1709] ss:$9 sm:$0xff] %v1503
    %1742 = vst [vmem:[%s1711] ss:$9 sm:$0xff] %v1504
    %1743 = vst [vmem:[%s1713] ss:$9 sm:$0xff] %v1505
    %1744 = vst [vmem:[%s1715] ss:$9 sm:$0xff] %v1506
    %1745 = vst [vmem:[%s1717] ss:$9 sm:$0xff] %v1507
    %v1746 = vld [vmem:[#allocation1] sm:$0xff]
    %1747 = vst [vmem:[#allocation1] ss:$9 sm:$0xff] %v1420
    %1748 = vst [vmem:[%s1705] ss:$9 sm:$0xff] %v1508
    %1749 = vst [vmem:[%s1707] ss:$9 sm:$0xff] %v1509
    %1750 = vst [vmem:[%s1709] ss:$9 sm:$0xff] %v1510
    %1751 = vst [vmem:[%s1711] ss:$9 sm:$0xff] %v1511
    %1752 = vst [vmem:[%s1713] ss:$9 sm:$0xff] %v1512
    %1753 = vst [vmem:[%s1715] ss:$9 sm:$0xff] %v1513
    %1754 = vst [vmem:[%s1717] ss:$9 sm:$0xff] %v1514
    %v1755 = vld [vmem:[#allocation1] sm:$0xff]
    %1756 = vst [vmem:[#allocation1] ss:$9 sm:$0xff] %v1421
    %1757 = vst [vmem:[%s1705] ss:$9 sm:$0xff] %v1515
    %1758 = vst [vmem:[%s1707] ss:$9 sm:$0xff] %v1516
    %1759 = vst [vmem:[%s1709] ss:$9 sm:$0xff] %v1517
    %1760 = vst [vmem:[%s1711] ss:$9 sm:$0xff] %v1518
    %1761 = vst [vmem:[%s1713] ss:$9 sm:$0xff] %v1519
    %1762 = vst [vmem:[%s1715] ss:$9 sm:$0xff] %v1520
    %1763 = vst [vmem:[%s1717] ss:$9 sm:$0xff] %v1521
    %v1764 = vld [vmem:[#allocation1] sm:$0xff]
    %1765 = vst [vmem:[#allocation1] ss:$9 sm:$0xff] %v1422
    %1766 = vst [vmem:[%s1705] ss:$9 sm:$0xff] %v1522
    %1767 = vst [vmem:[%s1707] ss:$9 sm:$0xff] %v1523
    %1768 = vst [vmem:[%s1709] ss:$9 sm:$0xff] %v1524
    %1769 = vst [vmem:[%s1711] ss:$9 sm:$0xff] %v1525
    %1770 = vst [vmem:[%s1713] ss:$9 sm:$0xff] %v1526
    %1771 = vst [vmem:[%s1715] ss:$9 sm:$0xff] %v1527
    %1772 = vst [vmem:[%s1717] ss:$9 sm:$0xff] %v1528
    %v1773 = vld [vmem:[#allocation1] sm:$0xff]
    %1774 = vst [vmem:[#allocation1] ss:$9 sm:$0xff] %v1423
    %1775 = vst [vmem:[%s1705] ss:$9 sm:$0xff] %v1529
    %1776 = vst [vmem:[%s1707] ss:$9 sm:$0xff] %v1530
    %1777 = vst [vmem:[%s1709] ss:$9 sm:$0xff] %v1531
    %1778 = vst [vmem:[%s1711] ss:$9 sm:$0xff] %v1532
    %1779 = vst [vmem:[%s1713] ss:$9 sm:$0xff] %v1533
    %1780 = vst [vmem:[%s1715] ss:$9 sm:$0xff] %v1534
    %1781 = vst [vmem:[%s1717] ss:$9 sm:$0xff] %v1535
    %v1782 = vld [vmem:[#allocation1] sm:$0xff]
    %1783 = vst [vmem:[#allocation1] ss:$9 sm:$0xff] %v1424
    %1784 = vst [vmem:[%s1705] ss:$9 sm:$0xff] %v1536
    %1785 = vst [vmem:[%s1707] ss:$9 sm:$0xff] %v1537
    %1786 = vst [vmem:[%s1709] ss:$9 sm:$0xff] %v1538
    %1787 = vst [vmem:[%s1711] ss:$9 sm:$0xff] %v1539
    %1788 = vst [vmem:[%s1713] ss:$9 sm:$0xff] %v1540
    %1789 = vst [vmem:[%s1715] ss:$9 sm:$0xff] %v1541
    %1790 = vst [vmem:[%s1717] ss:$9 sm:$0xff] %v1542
    %v1791 = vld [vmem:[#allocation1] sm:$0xff]
    %1792 = vst [vmem:[#allocation1] ss:$9 sm:$0xff] %v1425
    %1793 = vst [vmem:[%s1705] ss:$9 sm:$0xff] %v1543
    %1794 = vst [vmem:[%s1707] ss:$9 sm:$0xff] %v1544
    %1795 = vst [vmem:[%s1709] ss:$9 sm:$0xff] %v1545
    %1796 = vst [vmem:[%s1711] ss:$9 sm:$0xff] %v1546
    %1797 = vst [vmem:[%s1713] ss:$9 sm:$0xff] %v1547
    %1798 = vst [vmem:[%s1715] ss:$9 sm:$0xff] %v1548
    %1799 = vst [vmem:[%s1717] ss:$9 sm:$0xff] %v1549
    %v1800 = vld [vmem:[#allocation1] sm:$0xff]
    %1801 = vst [vmem:[#allocation1] ss:$9 sm:$0xff] %v1426
    %1802 = vst [vmem:[%s1705] ss:$9 sm:$0xff] %v1550
    %1803 = vst [vmem:[%s1707] ss:$9 sm:$0xff] %v1551
    %1804 = vst [vmem:[%s1709] ss:$9 sm:$0xff] %v1552
    %1805 = vst [vmem:[%s1711] ss:$9 sm:$0xff] %v1553
    %1806 = vst [vmem:[%s1713] ss:$9 sm:$0xff] %v1554
    %1807 = vst [vmem:[%s1715] ss:$9 sm:$0xff] %v1555
    %1808 = vst [vmem:[%s1717] ss:$9 sm:$0xff] %v1556
    %v1809 = vld [vmem:[#allocation1] sm:$0xff]
    %1810 = vst [vmem:[#allocation1] ss:$9 sm:$0xff] %v1427
    %1811 = vst [vmem:[%s1705] ss:$9 sm:$0xff] %v1557
    %1812 = vst [vmem:[%s1707] ss:$9 sm:$0xff] %v1558
    %1813 = vst [vmem:[%s1709] ss:$9 sm:$0xff] %v1559
    %1814 = vst [vmem:[%s1711] ss:$9 sm:$0xff] %v1560
    %1815 = vst [vmem:[%s1713] ss:$9 sm:$0xff] %v1561
    %1816 = vst [vmem:[%s1715] ss:$9 sm:$0xff] %v1562
    %1817 = vst [vmem:[%s1717] ss:$9 sm:$0xff] %v1563
    %v1818 = vld [vmem:[#allocation1] sm:$0xff]
    %1819 = vst [vmem:[#allocation1] ss:$9 sm:$0xff] %v1428
    %1820 = vst [vmem:[%s1705] ss:$9 sm:$0xff] %v1564
    %1821 = vst [vmem:[%s1707] ss:$9 sm:$0xff] %v1565
    %1822 = vst [vmem:[%s1709] ss:$9 sm:$0xff] %v1566
    %1823 = vst [vmem:[%s1711] ss:$9 sm:$0xff] %v1567
    %1824 = vst [vmem:[%s1713] ss:$9 sm:$0xff] %v1568
    %1825 = vst [vmem:[%s1715] ss:$9 sm:$0xff] %v1569
    %1826 = vst [vmem:[%s1717] ss:$9 sm:$0xff] %v1570
    %v1827 = vld [vmem:[#allocation1] sm:$0xff]
    %1828 = vst [vmem:[#allocation1] ss:$9 sm:$0xff] %v1429
    %1829 = vst [vmem:[%s1705] ss:$9 sm:$0xff] %v1571
    %1830 = vst [vmem:[%s1707] ss:$9 sm:$0xff] %v1572
    %1831 = vst [vmem:[%s1709] ss:$9 sm:$0xff] %v1573
    %1832 = vst [vmem:[%s1711] ss:$9 sm:$0xff] %v1574
    %1833 = vst [vmem:[%s1713] ss:$9 sm:$0xff] %v1575
    %1834 = vst [vmem:[%s1715] ss:$9 sm:$0xff] %v1576
    %1835 = vst [vmem:[%s1717] ss:$9 sm:$0xff] %v1577
    %v1836 = vld [vmem:[#allocation1] sm:$0xff]
    %1837 = vst [vmem:[#allocation1] ss:$9 sm:$0xff] %v1430
    %1838 = vst [vmem:[%s1705] ss:$9 sm:$0xff] %v1578
    %1839 = vst [vmem:[%s1707] ss:$9 sm:$0xff] %v1579
    %1840 = vst [vmem:[%s1709] ss:$9 sm:$0xff] %v1580
    %1841 = vst [vmem:[%s1711] ss:$9 sm:$0xff] %v1581
    %1842 = vst [vmem:[%s1713] ss:$9 sm:$0xff] %v1582
    %1843 = vst [vmem:[%s1715] ss:$9 sm:$0xff] %v1583
    %1844 = vst [vmem:[%s1717] ss:$9 sm:$0xff] %v1584
    %v1845 = vld [vmem:[#allocation1] sm:$0xff]
    %1846 = vst [vmem:[#allocation1] ss:$9 sm:$0xff] %v1431
    %1847 = vst [vmem:[%s1705] ss:$9 sm:$0xff] %v1585
    %1848 = vst [vmem:[%s1707] ss:$9 sm:$0xff] %v1586
    %1849 = vst [vmem:[%s1709] ss:$9 sm:$0xff] %v1587
    %1850 = vst [vmem:[%s1711] ss:$9 sm:$0xff] %v1588
    %1851 = vst [vmem:[%s1713] ss:$9 sm:$0xff] %v1589
    %1852 = vst [vmem:[%s1715] ss:$9 sm:$0xff] %v1590
    %1853 = vst [vmem:[%s1717] ss:$9 sm:$0xff] %v1591
    %v1854 = vld [vmem:[#allocation1] sm:$0xff]
    %1855 = vst [vmem:[#allocation1] ss:$9 sm:$0xff] %v1432
    %1856 = vst [vmem:[%s1705] ss:$9 sm:$0xff] %v1592
    %1857 = vst [vmem:[%s1707] ss:$9 sm:$0xff] %v1593
    %1858 = vst [vmem:[%s1709] ss:$9 sm:$0xff] %v1594
    %1859 = vst [vmem:[%s1711] ss:$9 sm:$0xff] %v1595
    %1860 = vst [vmem:[%s1713] ss:$9 sm:$0xff] %v1596
    %1861 = vst [vmem:[%s1715] ss:$9 sm:$0xff] %v1597
    %1862 = vst [vmem:[%s1717] ss:$9 sm:$0xff] %v1598
    %v1863 = vld [vmem:[#allocation1] sm:$0xff]
    %1864 = vst [vmem:[#allocation1] ss:$9 sm:$0xff] %v1433
    %1865 = vst [vmem:[%s1705] ss:$9 sm:$0xff] %v1599
    %1866 = vst [vmem:[%s1707] ss:$9 sm:$0xff] %v1600
    %1867 = vst [vmem:[%s1709] ss:$9 sm:$0xff] %v1601
    %1868 = vst [vmem:[%s1711] ss:$9 sm:$0xff] %v1602
    %1869 = vst [vmem:[%s1713] ss:$9 sm:$0xff] %v1603
    %1870 = vst [vmem:[%s1715] ss:$9 sm:$0xff] %v1604
    %1871 = vst [vmem:[%s1717] ss:$9 sm:$0xff] %v1605
    %v1872 = vld [vmem:[#allocation1] sm:$0xff]
    %1873 = vst [vmem:[#allocation1] ss:$9 sm:$0xff] %v1434
    %1874 = vst [vmem:[%s1705] ss:$9 sm:$0xff] %v1606
    %1875 = vst [vmem:[%s1707] ss:$9 sm:$0xff] %v1607
    %1876 = vst [vmem:[%s1709] ss:$9 sm:$0xff] %v1608
    %1877 = vst [vmem:[%s1711] ss:$9 sm:$0xff] %v1609
    %1878 = vst [vmem:[%s1713] ss:$9 sm:$0xff] %v1610
    %1879 = vst [vmem:[%s1715] ss:$9 sm:$0xff] %v1611
    %1880 = vst [vmem:[%s1717] ss:$9 sm:$0xff] %v1612
    %v1881 = vld [vmem:[#allocation1] sm:$0xff]
    %1882 = vst [vmem:[#allocation1] ss:$9 sm:$0xff] %v1435
    %1883 = vst [vmem:[%s1705] ss:$9 sm:$0xff] %v1613
    %1884 = vst [vmem:[%s1707] ss:$9 sm:$0xff] %v1614
    %1885 = vst [vmem:[%s1709] ss:$9 sm:$0xff] %v1615
    %1886 = vst [vmem:[%s1711] ss:$9 sm:$0xff] %v1616
    %1887 = vst [vmem:[%s1713] ss:$9 sm:$0xff] %v1617
    %1888 = vst [vmem:[%s1715] ss:$9 sm:$0xff] %v1618
    %1889 = vst [vmem:[%s1717] ss:$9 sm:$0xff] %v1619
    %v1890 = vld [vmem:[#allocation1] sm:$0xff]
    %1891 = vst [vmem:[#allocation1] ss:$9 sm:$0xff] %v1436
    %1892 = vst [vmem:[%s1705] ss:$9 sm:$0xff] %v1620
    %1893 = vst [vmem:[%s1707] ss:$9 sm:$0xff] %v1621
    %1894 = vst [vmem:[%s1709] ss:$9 sm:$0xff] %v1622
    %1895 = vst [vmem:[%s1711] ss:$9 sm:$0xff] %v1623
    %1896 = vst [vmem:[%s1713] ss:$9 sm:$0xff] %v1624
    %1897 = vst [vmem:[%s1715] ss:$9 sm:$0xff] %v1625
    %1898 = vst [vmem:[%s1717] ss:$9 sm:$0xff] %v1626
    %v1899 = vld [vmem:[#allocation1] sm:$0xff]
    %1900 = vst [vmem:[#allocation1] ss:$9 sm:$0xff] %v1437
    %1901 = vst [vmem:[%s1705] ss:$9 sm:$0xff] %v1627
    %1902 = vst [vmem:[%s1707] ss:$9 sm:$0xff] %v1628
    %1903 = vst [vmem:[%s1709] ss:$9 sm:$0xff] %v1629
    %1904 = vst [vmem:[%s1711] ss:$9 sm:$0xff] %v1630
    %1905 = vst [vmem:[%s1713] ss:$9 sm:$0xff] %v1631
    %1906 = vst [vmem:[%s1715] ss:$9 sm:$0xff] %v1632
    %1907 = vst [vmem:[%s1717] ss:$9 sm:$0xff] %v1633
    %v1908 = vld [vmem:[#allocation1] sm:$0xff]
    %1909 = vst [vmem:[#allocation1] ss:$9 sm:$0xff] %v1438
    %1910 = vst [vmem:[%s1705] ss:$9 sm:$0xff] %v1634
    %1911 = vst [vmem:[%s1707] ss:$9 sm:$0xff] %v1635
    %1912 = vst [vmem:[%s1709] ss:$9 sm:$0xff] %v1636
    %1913 = vst [vmem:[%s1711] ss:$9 sm:$0xff] %v1637
    %1914 = vst [vmem:[%s1713] ss:$9 sm:$0xff] %v1638
    %1915 = vst [vmem:[%s1715] ss:$9 sm:$0xff] %v1639
    %1916 = vst [vmem:[%s1717] ss:$9 sm:$0xff] %v1640
    %v1917 = vld [vmem:[#allocation1] sm:$0xff]
    %1918 = vst [vmem:[#allocation1] ss:$9 sm:$0xff] %v1439
    %1919 = vst [vmem:[%s1705] ss:$9 sm:$0xff] %v1641
    %1920 = vst [vmem:[%s1707] ss:$9 sm:$0xff] %v1642
    %1921 = vst [vmem:[%s1709] ss:$9 sm:$0xff] %v1643
    %1922 = vst [vmem:[%s1711] ss:$9 sm:$0xff] %v1644
    %1923 = vst [vmem:[%s1713] ss:$9 sm:$0xff] %v1645
    %1924 = vst [vmem:[%s1715] ss:$9 sm:$0xff] %v1646
    %1925 = vst [vmem:[%s1717] ss:$9 sm:$0xff] %v1647
    %v1926 = vld [vmem:[#allocation1] sm:$0xff]
    %1927 = vst [vmem:[#allocation1] ss:$9 sm:$0xff] %v1440
    %1928 = vst [vmem:[%s1705] ss:$9 sm:$0xff] %v1648
    %1929 = vst [vmem:[%s1707] ss:$9 sm:$0xff] %v1649
    %1930 = vst [vmem:[%s1709] ss:$9 sm:$0xff] %v1650
    %1931 = vst [vmem:[%s1711] ss:$9 sm:$0xff] %v1651
    %1932 = vst [vmem:[%s1713] ss:$9 sm:$0xff] %v1652
    %1933 = vst [vmem:[%s1715] ss:$9 sm:$0xff] %v1653
    %1934 = vst [vmem:[%s1717] ss:$9 sm:$0xff] %v1654
    %v1935 = vld [vmem:[#allocation1] sm:$0xff]
    %1936 = vst [vmem:[#allocation1] ss:$9 sm:$0xff] %v1441
    %1937 = vst [vmem:[%s1705] ss:$9 sm:$0xff] %v1655
    %1938 = vst [vmem:[%s1707] ss:$9 sm:$0xff] %v1656
    %1939 = vst [vmem:[%s1709] ss:$9 sm:$0xff] %v1657
    %1940 = vst [vmem:[%s1711] ss:$9 sm:$0xff] %v1658
    %1941 = vst [vmem:[%s1713] ss:$9 sm:$0xff] %v1659
    %1942 = vst [vmem:[%s1715] ss:$9 sm:$0xff] %v1660
    %1943 = vst [vmem:[%s1717] ss:$9 sm:$0xff] %v1661
    %v1944 = vld [vmem:[#allocation1] sm:$0xff]
    %1945 = vst [vmem:[#allocation1] ss:$9 sm:$0xff] %v1442
    %1946 = vst [vmem:[%s1705] ss:$9 sm:$0xff] %v1662
    %1947 = vst [vmem:[%s1707] ss:$9 sm:$0xff] %v1663
    %1948 = vst [vmem:[%s1709] ss:$9 sm:$0xff] %v1664
    %1949 = vst [vmem:[%s1711] ss:$9 sm:$0xff] %v1665
    %1950 = vst [vmem:[%s1713] ss:$9 sm:$0xff] %v1666
    %1951 = vst [vmem:[%s1715] ss:$9 sm:$0xff] %v1667
    %1952 = vst [vmem:[%s1717] ss:$9 sm:$0xff] %v1668
    %v1953 = vld [vmem:[#allocation1] sm:$0xff]
    %1954 = vst [vmem:[#allocation1] ss:$9 sm:$0xff] %v1443
    %1955 = vst [vmem:[%s1705] ss:$9 sm:$0xff] %v1669
    %1956 = vst [vmem:[%s1707] ss:$9 sm:$0xff] %v1670
    %1957 = vst [vmem:[%s1709] ss:$9 sm:$0xff] %v1671
    %1958 = vst [vmem:[%s1711] ss:$9 sm:$0xff] %v1672
    %1959 = vst [vmem:[%s1713] ss:$9 sm:$0xff] %v1673
    %1960 = vst [vmem:[%s1715] ss:$9 sm:$0xff] %v1674
    %1961 = vst [vmem:[%s1717] ss:$9 sm:$0xff] %v1675
    %v1962 = vld [vmem:[#allocation1] sm:$0xff]
    %1963 = vst [vmem:[#allocation1] ss:$9 sm:$0xff] %v1444
    %1964 = vst [vmem:[%s1705] ss:$9 sm:$0xff] %v1676
    %1965 = vst [vmem:[%s1707] ss:$9 sm:$0xff] %v1677
    %1966 = vst [vmem:[%s1709] ss:$9 sm:$0xff] %v1678
    %1967 = vst [vmem:[%s1711] ss:$9 sm:$0xff] %v1679
    %1968 = vst [vmem:[%s1713] ss:$9 sm:$0xff] %v1680
    %1969 = vst [vmem:[%s1715] ss:$9 sm:$0xff] %v1681
    %1970 = vst [vmem:[%s1717] ss:$9 sm:$0xff] %v1682
    %v1971 = vld [vmem:[#allocation1] sm:$0xff]
    %1972 = vst [vmem:[#allocation1] ss:$9 sm:$0xff] %v1445
    %1973 = vst [vmem:[%s1705] ss:$9 sm:$0xff] %v1683
    %1974 = vst [vmem:[%s1707] ss:$9 sm:$0xff] %v1684
    %1975 = vst [vmem:[%s1709] ss:$9 sm:$0xff] %v1685
    %1976 = vst [vmem:[%s1711] ss:$9 sm:$0xff] %v1686
    %1977 = vst [vmem:[%s1713] ss:$9 sm:$0xff] %v1687
    %1978 = vst [vmem:[%s1715] ss:$9 sm:$0xff] %v1688
    %1979 = vst [vmem:[%s1717] ss:$9 sm:$0xff] %v1689
    %v1980 = vld [vmem:[#allocation1] sm:$0xff]
    %1981 = vst [vmem:[#allocation1] ss:$9 sm:$0xff] %v1446
    %1982 = vst [vmem:[%s1705] ss:$9 sm:$0xff] %v1690
    %1983 = vst [vmem:[%s1707] ss:$9 sm:$0xff] %v1691
    %1984 = vst [vmem:[%s1709] ss:$9 sm:$0xff] %v1692
    %1985 = vst [vmem:[%s1711] ss:$9 sm:$0xff] %v1693
    %1986 = vst [vmem:[%s1713] ss:$9 sm:$0xff] %v1694
    %1987 = vst [vmem:[%s1715] ss:$9 sm:$0xff] %v1695
    %1988 = vst [vmem:[%s1717] ss:$9 sm:$0xff] %v1696
    %v1989 = vld [vmem:[#allocation1] sm:$0xff]
    %1990 = vst [vmem:[#allocation1] ss:$9 sm:$0xff] %v1447
    %1991 = vst [vmem:[%s1705] ss:$9 sm:$0xff] %v1697
    %1992 = vst [vmem:[%s1707] ss:$9 sm:$0xff] %v1698
    %1993 = vst [vmem:[%s1709] ss:$9 sm:$0xff] %v1699
    %1994 = vst [vmem:[%s1711] ss:$9 sm:$0xff] %v1700
    %1995 = vst [vmem:[%s1713] ss:$9 sm:$0xff] %v1701
    %1996 = vst [vmem:[%s1715] ss:$9 sm:$0xff] %v1702
    %1997 = vst [vmem:[%s1717] ss:$9 sm:$0xff] %v1703
    %v1998 = vld [vmem:[#allocation1] sm:$0xff]
    %1999 = vset.pattern.permute.xlu0 0
    %2000 = vperm.xlu0 %1999, %v1719
    %v2001 = vpop.permute.xlu0 %2000
    %2002 = vset.pattern.permute.xlu0 0
    %2003 = vperm.xlu0 %2002, %v1728
    %v2004 = vpop.permute.xlu0 %2003
    %2005 = vset.pattern.permute.xlu0 0
    %2006 = vperm.xlu0 %2005, %v1737
    %v2007 = vpop.permute.xlu0 %2006
    %2008 = vset.pattern.permute.xlu0 0
    %2009 = vperm.xlu0 %2008, %v1746
    %v2010 = vpop.permute.xlu0 %2009
    %2011 = vset.pattern.permute.xlu0 0
    %2012 = vperm.xlu0 %2011, %v1755
    %v2013 = vpop.permute.xlu0 %2012
    %2014 = vset.pattern.permute.xlu0 0
    %2015 = vperm.xlu0 %2014, %v1764
    %v2016 = vpop.permute.xlu0 %2015
    %2017 = vset.pattern.permute.xlu0 0
    %2018 = vperm.xlu0 %2017, %v1773
    %v2019 = vpop.permute.xlu0 %2018
    %2020 = vset.pattern.permute.xlu0 0
    %2021 = vperm.xlu0 %2020, %v1782
    %v2022 = vpop.permute.xlu0 %2021
    %2023 = vset.pattern.permute.xlu0 0
    %2024 = vperm.xlu0 %2023, %v1791
    %v2025 = vpop.permute.xlu0 %2024
    %2026 = vset.pattern.permute.xlu0 0
    %2027 = vperm.xlu0 %2026, %v1800
    %v2028 = vpop.permute.xlu0 %2027
    %2029 = vset.pattern.permute.xlu0 0
    %2030 = vperm.xlu0 %2029, %v1809
    %v2031 = vpop.permute.xlu0 %2030
    %2032 = vset.pattern.permute.xlu0 0
    %2033 = vperm.xlu0 %2032, %v1818
    %v2034 = vpop.permute.xlu0 %2033
    %2035 = vset.pattern.permute.xlu0 0
    %2036 = vperm.xlu0 %2035, %v1827
    %v2037 = vpop.permute.xlu0 %2036
    %2038 = vset.pattern.permute.xlu0 0
    %2039 = vperm.xlu0 %2038, %v1836
    %v2040 = vpop.permute.xlu0 %2039
    %2041 = vset.pattern.permute.xlu0 0
    %2042 = vperm.xlu0 %2041, %v1845
    %v2043 = vpop.permute.xlu0 %2042
    %2044 = vset.pattern.permute.xlu0 0
    %2045 = vperm.xlu0 %2044, %v1854
    %v2046 = vpop.permute.xlu0 %2045
    %2047 = vset.pattern.permute.xlu0 0
    %2048 = vperm.xlu0 %2047, %v1863
    %v2049 = vpop.permute.xlu0 %2048
    %2050 = vset.pattern.permute.xlu0 0
    %2051 = vperm.xlu0 %2050, %v1872
    %v2052 = vpop.permute.xlu0 %2051
    %2053 = vset.pattern.permute.xlu0 0
    %2054 = vperm.xlu0 %2053, %v1881
    %v2055 = vpop.permute.xlu0 %2054
    %2056 = vset.pattern.permute.xlu0 0
    %2057 = vperm.xlu0 %2056, %v1890
    %v2058 = vpop.permute.xlu0 %2057
    %2059 = vset.pattern.permute.xlu0 0
    %2060 = vperm.xlu0 %2059, %v1899
    %v2061 = vpop.permute.xlu0 %2060
    %2062 = vset.pattern.permute.xlu0 0
    %2063 = vperm.xlu0 %2062, %v1908
    %v2064 = vpop.permute.xlu0 %2063
    %2065 = vset.pattern.permute.xlu0 0
    %2066 = vperm.xlu0 %2065, %v1917
    %v2067 = vpop.permute.xlu0 %2066
    %2068 = vset.pattern.permute.xlu0 0
    %2069 = vperm.xlu0 %2068, %v1926
    %v2070 = vpop.permute.xlu0 %2069
    %2071 = vset.pattern.permute.xlu0 0
    %2072 = vperm.xlu0 %2071, %v1935
    %v2073 = vpop.permute.xlu0 %2072
    %2074 = vset.pattern.permute.xlu0 0
    %2075 = vperm.xlu0 %2074, %v1944
    %v2076 = vpop.permute.xlu0 %2075
    %2077 = vset.pattern.permute.xlu0 0
    %2078 = vperm.xlu0 %2077, %v1953
    %v2079 = vpop.permute.xlu0 %2078
    %2080 = vset.pattern.permute.xlu0 0
    %2081 = vperm.xlu0 %2080, %v1962
    %v2082 = vpop.permute.xlu0 %2081
    %2083 = vset.pattern.permute.xlu0 0
    %2084 = vperm.xlu0 %2083, %v1971
    %v2085 = vpop.permute.xlu0 %2084
    %2086 = vset.pattern.permute.xlu0 0
    %2087 = vperm.xlu0 %2086, %v1980
    %v2088 = vpop.permute.xlu0 %2087
    %2089 = vset.pattern.permute.xlu0 0
    %2090 = vperm.xlu0 %2089, %v1989
    %v2091 = vpop.permute.xlu0 %2090
    %2092 = vset.pattern.permute.xlu0 0
    %2093 = vperm.xlu0 %2092, %v1998
    %v2094 = vpop.permute.xlu0 %2093
    %v2095 = vlaneseq
    %v2096 = vand.u32 %v2095, 127
    %v2097 = vperm.slane %v2001, %v2096
    %v2098 = vadd.s32 %v2096, 4294967288
    %v2099 = vperm.slane %v2004, %v2098
    %vm2100 = vcmask 130112
    %v2101 = vsel %vm2100, %v2099, %v2097
    %v2102 = vadd.s32 %v2096, 4294967280
    %v2103 = vperm.slane %v2007, %v2102
    %vm2104 = vcmask 195712
    %v2105 = vsel %vm2104, %v2103, %v2101
    %v2106 = vadd.s32 %v2096, 4294967272
    %v2107 = vperm.slane %v2010, %v2106
    %vm2108 = vcmask 261312
    %v2109 = vsel %vm2108, %v2107, %v2105
    %v2110 = vadd.s32 %v2096, 4294967264
    %v2111 = vperm.slane %v2013, %v2110
    %vm2112 = vcmask 326912
    %v2113 = vsel %vm2112, %v2111, %v2109
    %v2114 = vadd.s32 %v2096, 4294967256
    %v2115 = vperm.slane %v2016, %v2114
    %vm2116 = vcmask 392512
    %v2117 = vsel %vm2116, %v2115, %v2113
    %v2118 = vadd.s32 %v2096, 4294967248
    %v2119 = vperm.slane %v2019, %v2118
    %vm2120 = vcmask 458112
    %v2121 = vsel %vm2120, %v2119, %v2117
    %v2122 = vadd.s32 %v2096, 4294967240
    %v2123 = vperm.slane %v2022, %v2122
    %vm2124 = vcmask 523712
    %v2125 = vsel %vm2124, %v2123, %v2121
    %v2126 = vadd.s32 %v2096, 4294967232
    %v2127 = vperm.slane %v2025, %v2126
    %vm2128 = vcmask 589312
    %v2129 = vsel %vm2128, %v2127, %v2125
    %v2130 = vadd.s32 %v2096, 4294967224
    %v2131 = vperm.slane %v2028, %v2130
    %vm2132 = vcmask 654912
    %v2133 = vsel %vm2132, %v2131, %v2129
    %v2134 = vadd.s32 %v2096, 4294967216
    %v2135 = vperm.slane %v2031, %v2134
    %vm2136 = vcmask 720512
    %v2137 = vsel %vm2136, %v2135, %v2133
    %v2138 = vadd.s32 %v2096, 4294967208
    %v2139 = vperm.slane %v2034, %v2138
    %vm2140 = vcmask 786112
    %v2141 = vsel %vm2140, %v2139, %v2137
    %v2142 = vadd.s32 %v2096, 4294967200
    %v2143 = vperm.slane %v2037, %v2142
    %vm2144 = vcmask 851712
    %v2145 = vsel %vm2144, %v2143, %v2141
    %v2146 = vadd.s32 %v2096, 4294967192
    %v2147 = vperm.slane %v2040, %v2146
    %vm2148 = vcmask 917312
    %v2149 = vsel %vm2148, %v2147, %v2145
    %v2150 = vadd.s32 %v2096, 4294967184
    %v2151 = vperm.slane %v2043, %v2150
    %vm2152 = vcmask 982912
    %v2153 = vsel %vm2152, %v2151, %v2149
    %v2154 = vadd.s32 %v2096, 4294967176
    %v2155 = vperm.slane %v2046, %v2154
    %vm2156 = vcmask 1048512
    %v2157 = vsel %vm2156, %v2155, %v2153
    %v2158 = vperm.slane %v2049, %v2096
    %v2159 = vperm.slane %v2052, %v2098
    %v2160 = vsel %vm2100, %v2159, %v2158
    %v2161 = vperm.slane %v2055, %v2102
    %v2162 = vsel %vm2104, %v2161, %v2160
    %v2163 = vperm.slane %v2058, %v2106
    %v2164 = vsel %vm2108, %v2163, %v2162
    %v2165 = vperm.slane %v2061, %v2110
    %v2166 = vsel %vm2112, %v2165, %v2164
    %v2167 = vperm.slane %v2064, %v2114
    %v2168 = vsel %vm2116, %v2167, %v2166
    %v2169 = vperm.slane %v2067, %v2118
    %v2170 = vsel %vm2120, %v2169, %v2168
    %v2171 = vperm.slane %v2070, %v2122
    %v2172 = vsel %vm2124, %v2171, %v2170
    %v2173 = vperm.slane %v2073, %v2126
    %v2174 = vsel %vm2128, %v2173, %v2172
    %v2175 = vperm.slane %v2076, %v2130
    %v2176 = vsel %vm2132, %v2175, %v2174
    %v2177 = vperm.slane %v2079, %v2134
    %v2178 = vsel %vm2136, %v2177, %v2176
    %v2179 = vperm.slane %v2082, %v2138
    %v2180 = vsel %vm2140, %v2179, %v2178
    %v2181 = vperm.slane %v2085, %v2142
    %v2182 = vsel %vm2144, %v2181, %v2180
    %v2183 = vperm.slane %v2088, %v2146
    %v2184 = vsel %vm2148, %v2183, %v2182
    %v2185 = vperm.slane %v2091, %v2150
    %v2186 = vsel %vm2152, %v2185, %v2184
    %v2187 = vperm.slane %v2094, %v2154
    %v2188 = vsel %vm2156, %v2187, %v2186
    %v2189 = vrot.slane %v2188, 7
    %vm2190 = vcmask 1040384
    %v2191 = vsel %vm2190, %v2157, %v2189
    %v2193 = vlaneseq
    %vm2194 = vcmp.ge.s32.totalorder %v2193, 0
    %vm2195 = vcmp.lt.s32.totalorder %v2193, 256
    %vm2196 = vmand %vm2194, %vm2195
    %2197 = vst.msk [vmem:[#allocation2] sm:$0x3] %vm2196, %v2191
    // Predicated region
    $region22: #{tpu_custom_call.1} parent=1 // pred_check
      _
    $region23: #{tpu_custom_call.1} parent=1 // pred_check_branch
      %2199 = sbr.rel (0) target = $region25
    $region24: #{tpu_custom_call.1} parent=1 // pred_region
      %2201 = vsyncadd [#allocation3], 0
      %s2203 = sshll.u32 [#allocation2], 4
      %s2204 = int_to_ptr.vmem [resolvable:$true] %s2203
      %s2205 = sshll.u32 %s5, 4
      %s2206 = int_to_ptr.hbm [resolvable:$true] %s2205
      %2208 = dma.vmem_to_hbm [thread:$0]  %s2204, 32, %s2206, [#allocation3]
    $region25: #{tpu_custom_call.1} parent=1 // pred_fallthru
      _
    // Predicated region
    $region26: #{tpu_custom_call.1} parent=1 // pred_check
      _
    $region27: #{tpu_custom_call.1} parent=1 // pred_check_branch
      %2210 = sbr.rel (0) target = $region29
    $region28: #{tpu_custom_call.1} parent=1 // pred_region
      %2212 = dma.done [#allocation3], 32
    $region29: #{tpu_custom_call.1} parent=1 // pred_fallthru
      _
    %2213 = vsyncpa [#allocation3], 1

</llo_original>
